<compile_context>
chip_gen: v5e
topology: v5e:2x2
jax: 0.10.0
libtpu: 0.0.40
codegen_flags: <defaults>
</compile_context>

<pallas_src>
import functools

import jax
import jax.numpy as jnp
from jax import lax
from jax.experimental import pallas as pl
from jax.experimental.pallas import tpu as pltpu


def _relu6(x):
    return jnp.clip(x, 0.0, 6.0)


def _pick_row_tile(ho, max_rows):
    """Largest row tile <= max_rows that divides Ho and keeps the output block
    8-sublane aligned, or the whole image if no such tile exists."""
    if ho <= max_rows:
        return ho
    d = (max_rows // 8) * 8
    while d >= 8:
        if ho % d == 0:
            return d
        d -= 8
    return ho


def inverted_residual_kernel(x_ref, w1_ref, b1_ref, wdw_ref, b2_ref,
                             w3_ref, wskip_ref, b3_ref, out_ref, pad_ref,
                             *, stride, H, W, TRo, conv_skip, identity_skip):
    """One (batch image, output row tile) grid step.

    x_ref    : (H+2, W+2, in_c)   spatially zero-padded input image (NHWC)
    w1_ref   : (in_c, ex_cp)      bf16 1x1 expansion weights (BN folded)
    b1_ref   : (1, ex_cp)         f32 folded BN bias
    wdw_ref  : (9, ex_cp)         f32 3x3 depthwise weights (BN folded), k=3*dy+dx
    b2_ref   : (1, ex_cp)         f32 folded BN bias
    w3_ref   : (ex_cp, out_c)     bf16 1x1 projection weights (BN folded)
    wskip_ref: (in_c, out_c)      bf16 1x1 skip-conv weights (used iff conv_skip)
    b3_ref   : (1, out_c)         f32 folded BN bias
    out_ref  : (TRo*Wo, out_c)    output rows of this tile
    pad_ref  : (TRd, W+2, ex_cp)  per-tile padded expanded activation (f32)
    """
    Wo = (W - 1) // stride + 1
    Wp = W + 2
    TRd = (TRo - 1) * stride + 3            # rows of padded activation per tile
    ex_cp = pad_ref.shape[-1]

    t = pl.program_id(1)
    row_step = TRo * stride
    p0 = pl.multiple_of(t * row_step, row_step)   # first padded-image row of tile

    # ---- input window: TRo*stride + 2 halo rows of the padded image ----
    xw = x_ref[pl.ds(p0, TRd)]                    # (TRd, Wp, in_c) f32

    # ---- 1x1 expansion conv (BN folded) + ReLU6: bf16 MXU, f32 accumulate ----
    xb = xw.reshape(TRd * Wp, xw.shape[-1]).astype(jnp.bfloat16)
    h = jnp.dot(xb, w1_ref[...], preferred_element_type=jnp.float32)
    h = _relu6(h + b1_ref[...])                   # (TRd*Wp, ex_cp) f32

    # ---- padded-activation scratch: one full-width aligned store, then fix up
    #      the spatial-padding positions (padded-x rows/cols give relu6(b1)
    #      there, which must read as zero for the depthwise conv). ----
    pad_ref[...] = h.reshape(TRd, Wp, ex_cp)
    zcol = jnp.zeros((TRd, 1, ex_cp), jnp.float32)
    pad_ref[:, 0:1, :] = zcol
    pad_ref[:, Wp - 1:Wp, :] = zcol
    zrow = jnp.zeros((Wp, ex_cp), jnp.float32)

    @pl.when(p0 == 0)                             # tile touches the top border
    def _():
        pad_ref[0] = zrow

    @pl.when(p0 + TRd == H + 2)                   # tile touches the bottom border
    def _():
        pad_ref[TRd - 1] = zrow

    # ---- 3x3 depthwise conv (pad=1, stride) as 9 shifted MACs, f32 VPU ----
    acc = jnp.zeros((TRo, Wo, ex_cp), jnp.float32)
    if stride == 1:
        for dy in range(3):
            for dx in range(3):
                win = pad_ref[dy:dy + TRo, dx:dx + Wo, :]
                acc = acc + win * wdw_ref[dy * 3 + dx, :]
    else:
        # TODO(synk): strided window reads; a contiguous band read with
        # in-register decimation may lower to fewer relayouts.
        for dy in range(3):
            for dx in range(3):
                win = pad_ref[pl.ds(dy, TRo, stride=stride),
                              pl.ds(dx, Wo, stride=stride), :]
                acc = acc + win * wdw_ref[dy * 3 + dx, :]
    h2 = _relu6(acc + b2_ref[0]).reshape(TRo * Wo, ex_cp)

    # ---- 1x1 projection (+ residual); the skip conv is a second small dot ----
    o = jnp.dot(h2.astype(jnp.bfloat16), w3_ref[...],
                preferred_element_type=jnp.float32)
    o = o + b3_ref[...]
    if conv_skip or identity_skip:                # stride == 1 only
        xs = x_ref[pl.ds(p0 + 1, TRo), 1:1 + Wo, :]
        xs = xs.reshape(TRo * Wo, xs.shape[-1])
        if identity_skip:                         # in_c == out_c: exact f32 add
            o = o + xs
        else:                                     # in_c != out_c: 1x1 skip conv
            o = o + jnp.dot(xs.astype(jnp.bfloat16), wskip_ref[...],
                            preferred_element_type=jnp.float32)

    out_ref[...] = o.astype(out_ref.dtype)


def fold_params(p, *, stride, in_c, out_c):
    """Offline folding: BN scales into the conv weights (eval mode), expanded
    channels zero-padded to a 128-lane multiple, MXU operands pre-cast to bf16
    (the depthwise / VPU path stays f32)."""
    ex_c = p["w1"].shape[1]
    ex_cp = ((ex_c + 127) // 128) * 128
    pc = ex_cp - ex_c
    w1 = jnp.pad(p["w1"] * p["s1"], ((0, 0), (0, pc))).astype(jnp.bfloat16)
    b1 = jnp.pad(p["b1"], ((0, 0), (0, pc))).astype(jnp.float32)
    wdw = jnp.pad(p["wdw"] * p["s2"], ((0, 0), (0, pc))).astype(jnp.float32)
    b2 = jnp.pad(p["b2"], ((0, 0), (0, pc))).astype(jnp.float32)
    w3 = jnp.pad(p["w3"] * p["s3"], ((0, pc), (0, 0))).astype(jnp.bfloat16)
    b3 = p["b3"].astype(jnp.float32)
    wskip = p["wskip"].astype(jnp.bfloat16)
    use_skip = stride == 1
    return dict(w1=w1, b1=b1, wdw=wdw, b2=b2, w3=w3, b3=b3, wskip=wskip,
                identity_skip=use_skip and in_c == out_c,
                conv_skip=use_skip and in_c != out_c)


def inverted_residual_block(x_nchw, fp, *, stride, max_tile_rows=16):
    """NCHW in, NCHW out; the kernel works on spatially padded NHWC row tiles."""
    assert stride in (1, 2)
    N, in_c, H, W = x_nchw.shape
    out_c = fp["w3"].shape[1]
    ex_cp = fp["w1"].shape[1]
    Ho = (H - 1) // stride + 1
    Wo = (W - 1) // stride + 1
    Wp = W + 2

    TRo = _pick_row_tile(Ho, max_tile_rows)
    T = Ho // TRo
    TRd = (TRo - 1) * stride + 3

    # NCHW -> NHWC plus spatial zero pad of 1 (the depthwise "same" padding);
    # the kernel re-zeroes the pad positions of the *expanded* activation.
    # TODO(synk): keep activations NHWC end-to-end in a full MobileUNet and
    # drop this transpose/pad round trip through HBM.
    x = jnp.transpose(x_nchw, (0, 2, 3, 1)).astype(jnp.float32)
    x = jnp.pad(x, ((0, 0), (1, 1), (1, 1), (0, 0)))

    kernel = functools.partial(
        inverted_residual_kernel, stride=stride, H=H, W=W, TRo=TRo,
        conv_skip=fp["conv_skip"], identity_skip=fp["identity_skip"])

    weights = (fp["w1"], fp["b1"], fp["wdw"], fp["b2"],
               fp["w3"], fp["wskip"], fp["b3"])

    # Row-tile working-set estimate -> VMEM budget with headroom, capped well
    # below v7x's 64 MiB physical VMEM (review item).
    est = ((H + 2) * Wp * in_c * 4 * 2                 # resident input image (2 bufs)
           + TRo * Wo * out_c * 4 * 2                  # output tile (2 bufs)
           + TRd * Wp * ex_cp * 4                      # pad scratch
           + 4 * TRd * Wp * ex_cp * 4                  # h / acc / window temporaries
           + 2 * sum(int(w.size) * w.dtype.itemsize for w in weights))
    vmem_limit = int(min(max(4 * est, 32 * 1024 * 1024), 40 * 1024 * 1024))

    out = pl.pallas_call(
        kernel,
        out_shape=jax.ShapeDtypeStruct((N, Ho * Wo, out_c), jnp.float32),
        grid=(N, T),
        in_specs=[pl.BlockSpec((None, H + 2, Wp, in_c),
                               lambda n, t: (n, 0, 0, 0))]
                 + [pl.BlockSpec(w.shape, lambda n, t, nd=w.ndim: (0,) * nd)
                    for w in weights],
        out_specs=pl.BlockSpec((None, TRo * Wo, out_c), lambda n, t: (n, t, 0)),
        scratch_shapes=[pltpu.VMEM((TRd, Wp, ex_cp), jnp.float32)],
        compiler_params=pltpu.CompilerParams(
            dimension_semantics=("parallel", "parallel"),
            vmem_limit_bytes=vmem_limit),
    )(x, *weights)

    out = out.reshape(N, Ho, Wo, out_c)
    return jnp.transpose(out, (0, 3, 1, 2))


def make_params(key, in_c, out_c, expansion_factor=6):
    """Deterministic synthetic params; BN kept as separate (scale, bias)."""
    ex_c = int(in_c * expansion_factor)
    ks = jax.random.split(key, 8)

    def bn(k, c):
        k1, k2, k3, k4 = jax.random.split(k, 4)
        gamma = jax.random.uniform(k1, (c,), minval=0.5, maxval=1.5)
        beta = 0.1 * jax.random.normal(k2, (c,))
        mean = 0.1 * jax.random.normal(k3, (c,))
        var = jax.random.uniform(k4, (c,), minval=0.5, maxval=1.5)
        scale = gamma / jnp.sqrt(var + 1e-5)
        bias = beta - mean * scale
        return (scale.reshape(1, c).astype(jnp.float32),
                bias.reshape(1, c).astype(jnp.float32))

    w1 = 0.2 * jax.random.normal(ks[0], (in_c, ex_c), jnp.float32)
    s1, b1 = bn(ks[1], ex_c)
    wdw = 0.2 * jax.random.normal(ks[2], (9, ex_c), jnp.float32)
    s2, b2 = bn(ks[3], ex_c)
    w3 = 0.2 * jax.random.normal(ks[4], (ex_c, out_c), jnp.float32)
    s3, b3 = bn(ks[5], out_c)
    wskip = 0.2 * jax.random.normal(ks[6], (in_c, out_c), jnp.float32)
    return dict(w1=w1, s1=s1, b1=b1, wdw=wdw, s2=s2, b2=b2,
                w3=w3, s3=s3, b3=b3, wskip=wskip)


def reference(x, p, *, stride):
    """Pure-JAX f32 NCHW reference (eval-mode BN)."""
    dn = ("NCHW", "OIHW", "NCHW")
    in_c = x.shape[1]
    ex_c = p["w1"].shape[1]
    out_c = p["w3"].shape[1]

    w1 = p["w1"].T.reshape(ex_c, in_c, 1, 1)
    h = lax.conv_general_dilated(x, w1, (1, 1), "VALID", dimension_numbers=dn)
    h = jnp.clip(h * p["s1"].reshape(1, -1, 1, 1) + p["b1"].reshape(1, -1, 1, 1), 0, 6)

    wdw = p["wdw"].T.reshape(ex_c, 1, 3, 3)
    h = lax.conv_general_dilated(h, wdw, (stride, stride), ((1, 1), (1, 1)),
                                 dimension_numbers=dn, feature_group_count=ex_c)
    h = jnp.clip(h * p["s2"].reshape(1, -1, 1, 1) + p["b2"].reshape(1, -1, 1, 1), 0, 6)

    w3 = p["w3"].T.reshape(out_c, ex_c, 1, 1)
    o = lax.conv_general_dilated(h, w3, (1, 1), "VALID", dimension_numbers=dn)
    o = o * p["s3"].reshape(1, -1, 1, 1) + p["b3"].reshape(1, -1, 1, 1)

    if stride == 1:
        xin = x
        if in_c != out_c:
            wsk = p["wskip"].T.reshape(out_c, in_c, 1, 1)
            xin = lax.conv_general_dilated(x, wsk, (1, 1), "VALID",
                                           dimension_numbers=dn)
        o = o + xin
    return o


def reference_matched(x_nchw, fp, *, stride):
    """Reference that matches the kernel's bf16 rounding points (bf16 MXU
    operands, f32 accumulation / VPU path) for a tight numerical check."""
    xn = jnp.transpose(x_nchw, (0, 2, 3, 1)).astype(jnp.float32)
    N, H, W, _ = xn.shape
    Ho = (H - 1) // stride + 1
    Wo = (W - 1) // stride + 1
    ex_cp = fp["w1"].shape[1]

    xr = xn.astype(jnp.bfloat16).astype(jnp.float32)
    hp = jnp.einsum("nhwc,ce->nhwe", xr, fp["w1"].astype(jnp.float32),
                    precision=lax.Precision.HIGHEST)
    hp = jnp.clip(hp + fp["b1"].reshape(1, 1, 1, -1), 0.0, 6.0)
    hp = jnp.pad(hp, ((0, 0), (1, 1), (1, 1), (0, 0)))

    acc = jnp.zeros((N, Ho, Wo, ex_cp), jnp.float32)
    for dy in range(3):
        for dx in range(3):
            win = hp[:, dy:dy + (Ho - 1) * stride + 1:stride,
                     dx:dx + (Wo - 1) * stride + 1:stride, :]
            acc = acc + win * fp["wdw"][dy * 3 + dx]
    h2 = jnp.clip(acc + fp["b2"].reshape(1, 1, 1, -1), 0.0, 6.0)

    h2r = h2.astype(jnp.bfloat16).astype(jnp.float32)
    o = jnp.einsum("nhwe,eo->nhwo", h2r, fp["w3"].astype(jnp.float32),
                   precision=lax.Precision.HIGHEST)
    o = o + fp["b3"].reshape(1, 1, 1, -1)
    if stride == 1:
        if fp["identity_skip"]:
            o = o + xn
        else:
            o = o + jnp.einsum("nhwc,co->nhwo", xr, fp["wskip"].astype(jnp.float32),
                               precision=lax.Precision.HIGHEST)
    return jnp.transpose(o, (0, 3, 1, 2))


if __name__ == "__main__":
    key = jax.random.PRNGKey(0)
    tests = [
        # (N, in_c, out_c, H, W, stride)   -- expansion_factor = 6
        (2, 4, 8, 16, 16, 1),    # residual with 1x1 skip conv, 2 row tiles
        (2, 8, 8, 16, 16, 1),    # identity residual, 2 row tiles
        (2, 4, 8, 16, 16, 2),    # stride-2 downsample, single tile
        (1, 4, 8, 32, 32, 2),    # stride-2, 2 row tiles
        (1, 4, 8, 17, 16, 2),    # stride-2, odd H (ceil output size, bottom pad)
    ]
    for (N, in_c, out_c, H, W, stride) in tests:
        key, k_x, k_p = jax.random.split(key, 3)
        x = jax.random.normal(k_x, (N, in_c, H, W), jnp.float32)
        params = make_params(k_p, in_c, out_c, expansion_factor=6)
        folded = fold_params(params, stride=stride, in_c=in_c, out_c=out_c)

        y = inverted_residual_block(x, folded, stride=stride, max_tile_rows=8)
        y = jax.block_until_ready(y)

        # Tight check against the precision-matched reference (verifies the
        # kernel computation itself, including tiling/halo/padding handling).
        y_m = reference_matched(x, folded, stride=stride)
        assert y.shape == y_m.shape, (y.shape, y_m.shape)
        err_m = float(jnp.max(jnp.abs(y - y_m)))
        assert err_m < 2e-3, (
            f"matched-precision mismatch (stride={stride}, in_c={in_c}, "
            f"out_c={out_c}, H={H}, W={W}): max abs err = {err_m}")

        # Loose check against the pure-f32 eval-mode reference (the tolerance
        # reflects the deliberate bf16 rounding of the MXU operands).
        y_f = reference(x, params, stride=stride)
        assert y.shape == y_f.shape, (y.shape, y_f.shape)
        err_f = float(jnp.max(jnp.abs(y - y_f)))
        tol_f = 5e-3 + 0.05 * float(jnp.max(jnp.abs(y_f)))
        assert err_f < tol_f, (
            f"f32 reference mismatch (stride={stride}, in_c={in_c}, "
            f"out_c={out_c}): max abs err = {err_f} (tol {tol_f})")

    print("KERNEL_OK")
</pallas_src>

<mosaic_0001>
module attributes {stable_mosaic.version = 11 : i64} {
  func.func @inverted_residual_kernel(%arg0: i32, %arg1: i32, %arg2: memref<1x18x18x4xf32, #tpu.memory_space<vmem>>, %arg3: memref<4x128xbf16, #tpu.memory_space<vmem>>, %arg4: memref<1x128xf32, #tpu.memory_space<vmem>>, %arg5: memref<9x128xf32, #tpu.memory_space<vmem>>, %arg6: memref<1x128xf32, #tpu.memory_space<vmem>>, %arg7: memref<128x8xbf16, #tpu.memory_space<vmem>>, %arg8: memref<4x8xbf16, #tpu.memory_space<vmem>>, %arg9: memref<1x8xf32, #tpu.memory_space<vmem>>, %arg10: memref<1x128x8xf32, #tpu.memory_space<vmem>>, %arg11: memref<10x18x128xf32, #tpu.memory_space<vmem>>) attributes {dimension_semantics = [#tpu.dimension_semantics<parallel>, #tpu.dimension_semantics<parallel>], iteration_bounds = array<i64: 2, 2>, scalar_prefetch = 0 : i64, scratch_operands = 1 : i64, tpu.core_type = #tpu.core_type<tc>, window_params = [{transform_indices = @transform_0, window_bounds = array<i64: 1, 18, 18, 4>}, {pipeline_mode = #tpu.pipeline_mode<synchronous>, transform_indices = @transform_1, window_bounds = array<i64: 4, 128>}, {pipeline_mode = #tpu.pipeline_mode<synchronous>, transform_indices = @transform_2, window_bounds = array<i64: 1, 128>}, {pipeline_mode = #tpu.pipeline_mode<synchronous>, transform_indices = @transform_3, window_bounds = array<i64: 9, 128>}, {pipeline_mode = #tpu.pipeline_mode<synchronous>, transform_indices = @transform_4, window_bounds = array<i64: 1, 128>}, {pipeline_mode = #tpu.pipeline_mode<synchronous>, transform_indices = @transform_5, window_bounds = array<i64: 128, 8>}, {pipeline_mode = #tpu.pipeline_mode<synchronous>, transform_indices = @transform_6, window_bounds = array<i64: 4, 8>}, {pipeline_mode = #tpu.pipeline_mode<synchronous>, transform_indices = @transform_7, window_bounds = array<i64: 1, 8>}, {transform_indices = @transform_8, window_bounds = array<i64: 1, 128, 8>}]} {
    %c8_i32 = arith.constant 8 : i32
    %0 = arith.muli %arg1, %c8_i32 : i32
    %1 = tpu.assume_multiple %0, 8 : i32
    %c0 = arith.constant 0 : index
    %2 = arith.index_cast %1 : i32 to index
    %c0_0 = arith.constant 0 : index
    %c0_1 = arith.constant 0 : index
    %3 = vector.load %arg2[%c0, %2, %c0_0, %c0_1] : memref<1x18x18x4xf32, #tpu.memory_space<vmem>>, vector<1x10x18x4xf32>
    %4 = vector.shape_cast %3 : vector<1x10x18x4xf32> to vector<10x18x4xf32>
    %5 = vector.shape_cast %4 : vector<10x18x4xf32> to vector<180x4xf32>
    %6 = arith.truncf %5 : vector<180x4xf32> to vector<180x4xbf16>
    %c0_2 = arith.constant 0 : index
    %c0_3 = arith.constant 0 : index
    %7 = vector.load %arg3[%c0_2, %c0_3] : memref<4x128xbf16, #tpu.memory_space<vmem>>, vector<4x128xbf16>
    %cst = arith.constant dense<0.000000e+00> : vector<180x128xf32>
    %8 = tpu.matmul %6, %7, %cst {dimension_numbers = #tpu.dot_dimension_numbers<[1], [0], [0], [1], [0, 0, 1, 1], [], []>} : vector<180x4xbf16>, vector<4x128xbf16>, vector<180x128xf32> -> vector<180x128xf32>
    %c0_4 = arith.constant 0 : index
    %c0_5 = arith.constant 0 : index
    %9 = vector.load %arg4[%c0_4, %c0_5] : memref<1x128xf32, #tpu.memory_space<vmem>>, vector<1x128xf32>
    %10 = vector.broadcast %9 : vector<1x128xf32> to vector<180x128xf32>
    %11 = arith.addf %8, %10 : vector<180x128xf32>
    %cst_6 = arith.constant 0.000000e+00 : f32
    %cst_7 = arith.constant 6.000000e+00 : f32
    %12 = vector.broadcast %cst_6 : f32 to vector<180x128xf32>
    %13 = arith.maximumf %12, %11 : vector<180x128xf32>
    %14 = vector.broadcast %cst_7 : f32 to vector<180x128xf32>
    %15 = arith.minimumf %14, %13 : vector<180x128xf32>
    %16 = vector.shape_cast %15 : vector<180x128xf32> to vector<10x18x128xf32>
    %c0_8 = arith.constant 0 : index
    %c0_9 = arith.constant 0 : index
    %c0_10 = arith.constant 0 : index
    %17 = vector.load %arg11[%c0_8, %c0_9, %c0_10] : memref<10x18x128xf32, #tpu.memory_space<vmem>>, vector<10x18x128xf32>
    tpu.vector_store %arg11[%c0_8, %c0_9, %c0_10], %16 {strides = array<i32>} : memref<10x18x128xf32, #tpu.memory_space<vmem>>, vector<10x18x128xf32>,
    %cst_11 = arith.constant 0.000000e+00 : f32
    %18 = vector.broadcast %cst_11 : f32 to vector<10x1x128xf32>
    %c0_12 = arith.constant 0 : index
    %c0_13 = arith.constant 0 : index
    %c0_14 = arith.constant 0 : index
    %19 = vector.load %arg11[%c0_12, %c0_13, %c0_14] : memref<10x18x128xf32, #tpu.memory_space<vmem>>, vector<10x1x128xf32>
    tpu.vector_store %arg11[%c0_12, %c0_13, %c0_14], %18 {strides = array<i32>} : memref<10x18x128xf32, #tpu.memory_space<vmem>>, vector<10x1x128xf32>,
    %c0_15 = arith.constant 0 : index
    %c17 = arith.constant 17 : index
    %c0_16 = arith.constant 0 : index
    %20 = vector.load %arg11[%c0_15, %c17, %c0_16] : memref<10x18x128xf32, #tpu.memory_space<vmem>>, vector<10x1x128xf32>
    tpu.vector_store %arg11[%c0_15, %c17, %c0_16], %18 {strides = array<i32>} : memref<10x18x128xf32, #tpu.memory_space<vmem>>, vector<10x1x128xf32>,
    %cst_17 = arith.constant 0.000000e+00 : f32
    %21 = vector.broadcast %cst_17 : f32 to vector<18x128xf32>
    %c0_i32 = arith.constant 0 : i32
    %22 = arith.cmpi eq, %1, %c0_i32 : i32
    %23 = arith.extui %22 : i1 to i32
    %c0_i32_18 = arith.constant 0 : i32
    %24 = arith.cmpi ne, %23, %c0_i32_18 : i32
    scf.if %24 {
      %c0_76 = arith.constant 0 : index
      %c0_77 = arith.constant 0 : index
      %c0_78 = arith.constant 0 : index
      %121 = vector.load %arg11[%c0_76, %c0_77, %c0_78] : memref<10x18x128xf32, #tpu.memory_space<vmem>>, vector<1x18x128xf32>
      %122 = vector.shape_cast %121 : vector<1x18x128xf32> to vector<18x128xf32>
      %123 = vector.shape_cast %21 : vector<18x128xf32> to vector<1x18x128xf32>
      tpu.vector_store %arg11[%c0_76, %c0_77, %c0_78], %123 {strides = array<i32>} : memref<10x18x128xf32, #tpu.memory_space<vmem>>, vector<1x18x128xf32>,
    } else {
    }
    %c10_i32 = arith.constant 10 : i32
    %25 = arith.addi %1, %c10_i32 : i32
    %c18_i32 = arith.constant 18 : i32
    %26 = arith.cmpi eq, %25, %c18_i32 : i32
    %27 = arith.extui %26 : i1 to i32
    %c0_i32_19 = arith.constant 0 : i32
    %28 = arith.cmpi ne, %27, %c0_i32_19 : i32
    scf.if %28 {
      %c9 = arith.constant 9 : index
      %c0_76 = arith.constant 0 : index
      %c0_77 = arith.constant 0 : index
      %121 = vector.load %arg11[%c9, %c0_76, %c0_77] : memref<10x18x128xf32, #tpu.memory_space<vmem>>, vector<1x18x128xf32>
      %122 = vector.shape_cast %121 : vector<1x18x128xf32> to vector<18x128xf32>
      %123 = vector.shape_cast %21 : vector<18x128xf32> to vector<1x18x128xf32>
      tpu.vector_store %arg11[%c9, %c0_76, %c0_77], %123 {strides = array<i32>} : memref<10x18x128xf32, #tpu.memory_space<vmem>>, vector<1x18x128xf32>,
    } else {
    }
    %cst_20 = arith.constant 0.000000e+00 : f32
    %29 = vector.broadcast %cst_20 : f32 to vector<8x16x128xf32>
    %c0_21 = arith.constant 0 : index
    %c0_22 = arith.constant 0 : index
    %c0_23 = arith.constant 0 : index
    %30 = vector.load %arg11[%c0_21, %c0_22, %c0_23] : memref<10x18x128xf32, #tpu.memory_space<vmem>>, vector<8x16x128xf32>
    %c0_24 = arith.constant 0 : index
    %c0_25 = arith.constant 0 : index
    %31 = vector.load %arg5[%c0_24, %c0_25] : memref<9x128xf32, #tpu.memory_space<vmem>>, vector<1x128xf32>
    %32 = vector.shape_cast %31 : vector<1x128xf32> to vector<128xf32>
    %33 = vector.shape_cast %32 : vector<128xf32> to vector<1x1x128xf32>
    %34 = vector.broadcast %33 : vector<1x1x128xf32> to vector<8x16x128xf32>
    %35 = arith.mulf %30, %34 : vector<8x16x128xf32>
    %36 = arith.addf %29, %35 : vector<8x16x128xf32>
    %c0_26 = arith.constant 0 : index
    %c1 = arith.constant 1 : index
    %c0_27 = arith.constant 0 : index
    %37 = vector.load %arg11[%c0_26, %c1, %c0_27] : memref<10x18x128xf32, #tpu.memory_space<vmem>>, vector<8x16x128xf32>
    %c1_28 = arith.constant 1 : index
    %c0_29 = arith.constant 0 : index
    %38 = vector.load %arg5[%c1_28, %c0_29] : memref<9x128xf32, #tpu.memory_space<vmem>>, vector<1x128xf32>
    %39 = vector.shape_cast %38 : vector<1x128xf32> to vector<128xf32>
    %40 = vector.shape_cast %39 : vector<128xf32> to vector<1x1x128xf32>
    %41 = vector.broadcast %40 : vector<1x1x128xf32> to vector<8x16x128xf32>
    %42 = arith.mulf %37, %41 : vector<8x16x128xf32>
    %43 = arith.addf %36, %42 : vector<8x16x128xf32>
    %c0_30 = arith.constant 0 : index
    %c2 = arith.constant 2 : index
    %c0_31 = arith.constant 0 : index
    %44 = vector.load %arg11[%c0_30, %c2, %c0_31] : memref<10x18x128xf32, #tpu.memory_space<vmem>>, vector<8x16x128xf32>
    %c2_32 = arith.constant 2 : index
    %c0_33 = arith.constant 0 : index
    %45 = vector.load %arg5[%c2_32, %c0_33] : memref<9x128xf32, #tpu.memory_space<vmem>>, vector<1x128xf32>
    %46 = vector.shape_cast %45 : vector<1x128xf32> to vector<128xf32>
    %47 = vector.shape_cast %46 : vector<128xf32> to vector<1x1x128xf32>
    %48 = vector.broadcast %47 : vector<1x1x128xf32> to vector<8x16x128xf32>
    %49 = arith.mulf %44, %48 : vector<8x16x128xf32>
    %50 = arith.addf %43, %49 : vector<8x16x128xf32>
    %c1_34 = arith.constant 1 : index
    %c0_35 = arith.constant 0 : index
    %c0_36 = arith.constant 0 : index
    %51 = vector.load %arg11[%c1_34, %c0_35, %c0_36] : memref<10x18x128xf32, #tpu.memory_space<vmem>>, vector<8x16x128xf32>
    %c3 = arith.constant 3 : index
    %c0_37 = arith.constant 0 : index
    %52 = vector.load %arg5[%c3, %c0_37] : memref<9x128xf32, #tpu.memory_space<vmem>>, vector<1x128xf32>
    %53 = vector.shape_cast %52 : vector<1x128xf32> to vector<128xf32>
    %54 = vector.shape_cast %53 : vector<128xf32> to vector<1x1x128xf32>
    %55 = vector.broadcast %54 : vector<1x1x128xf32> to vector<8x16x128xf32>
    %56 = arith.mulf %51, %55 : vector<8x16x128xf32>
    %57 = arith.addf %50, %56 : vector<8x16x128xf32>
    %c1_38 = arith.constant 1 : index
    %c1_39 = arith.constant 1 : index
    %c0_40 = arith.constant 0 : index
    %58 = vector.load %arg11[%c1_38, %c1_39, %c0_40] : memref<10x18x128xf32, #tpu.memory_space<vmem>>, vector<8x16x128xf32>
    %c4 = arith.constant 4 : index
    %c0_41 = arith.constant 0 : index
    %59 = vector.load %arg5[%c4, %c0_41] : memref<9x128xf32, #tpu.memory_space<vmem>>, vector<1x128xf32>
    %60 = vector.shape_cast %59 : vector<1x128xf32> to vector<128xf32>
    %61 = vector.shape_cast %60 : vector<128xf32> to vector<1x1x128xf32>
    %62 = vector.broadcast %61 : vector<1x1x128xf32> to vector<8x16x128xf32>
    %63 = arith.mulf %58, %62 : vector<8x16x128xf32>
    %64 = arith.addf %57, %63 : vector<8x16x128xf32>
    %c1_42 = arith.constant 1 : index
    %c2_43 = arith.constant 2 : index
    %c0_44 = arith.constant 0 : index
    %65 = vector.load %arg11[%c1_42, %c2_43, %c0_44] : memref<10x18x128xf32, #tpu.memory_space<vmem>>, vector<8x16x128xf32>
    %c5 = arith.constant 5 : index
    %c0_45 = arith.constant 0 : index
    %66 = vector.load %arg5[%c5, %c0_45] : memref<9x128xf32, #tpu.memory_space<vmem>>, vector<1x128xf32>
    %67 = vector.shape_cast %66 : vector<1x128xf32> to vector<128xf32>
    %68 = vector.shape_cast %67 : vector<128xf32> to vector<1x1x128xf32>
    %69 = vector.broadcast %68 : vector<1x1x128xf32> to vector<8x16x128xf32>
    %70 = arith.mulf %65, %69 : vector<8x16x128xf32>
    %71 = arith.addf %64, %70 : vector<8x16x128xf32>
    %c2_46 = arith.constant 2 : index
    %c0_47 = arith.constant 0 : index
    %c0_48 = arith.constant 0 : index
    %72 = vector.load %arg11[%c2_46, %c0_47, %c0_48] : memref<10x18x128xf32, #tpu.memory_space<vmem>>, vector<8x16x128xf32>
    %c6 = arith.constant 6 : index
    %c0_49 = arith.constant 0 : index
    %73 = vector.load %arg5[%c6, %c0_49] : memref<9x128xf32, #tpu.memory_space<vmem>>, vector<1x128xf32>
    %74 = vector.shape_cast %73 : vector<1x128xf32> to vector<128xf32>
    %75 = vector.shape_cast %74 : vector<128xf32> to vector<1x1x128xf32>
    %76 = vector.broadcast %75 : vector<1x1x128xf32> to vector<8x16x128xf32>
    %77 = arith.mulf %72, %76 : vector<8x16x128xf32>
    %78 = arith.addf %71, %77 : vector<8x16x128xf32>
    %c2_50 = arith.constant 2 : index
    %c1_51 = arith.constant 1 : index
    %c0_52 = arith.constant 0 : index
    %79 = vector.load %arg11[%c2_50, %c1_51, %c0_52] : memref<10x18x128xf32, #tpu.memory_space<vmem>>, vector<8x16x128xf32>
    %c7 = arith.constant 7 : index
    %c0_53 = arith.constant 0 : index
    %80 = vector.load %arg5[%c7, %c0_53] : memref<9x128xf32, #tpu.memory_space<vmem>>, vector<1x128xf32>
    %81 = vector.shape_cast %80 : vector<1x128xf32> to vector<128xf32>
    %82 = vector.shape_cast %81 : vector<128xf32> to vector<1x1x128xf32>
    %83 = vector.broadcast %82 : vector<1x1x128xf32> to vector<8x16x128xf32>
    %84 = arith.mulf %79, %83 : vector<8x16x128xf32>
    %85 = arith.addf %78, %84 : vector<8x16x128xf32>
    %c2_54 = arith.constant 2 : index
    %c2_55 = arith.constant 2 : index
    %c0_56 = arith.constant 0 : index
    %86 = vector.load %arg11[%c2_54, %c2_55, %c0_56] : memref<10x18x128xf32, #tpu.memory_space<vmem>>, vector<8x16x128xf32>
    %c8 = arith.constant 8 : index
    %c0_57 = arith.constant 0 : index
    %87 = vector.load %arg5[%c8, %c0_57] : memref<9x128xf32, #tpu.memory_space<vmem>>, vector<1x128xf32>
    %88 = vector.shape_cast %87 : vector<1x128xf32> to vector<128xf32>
    %89 = vector.shape_cast %88 : vector<128xf32> to vector<1x1x128xf32>
    %90 = vector.broadcast %89 : vector<1x1x128xf32> to vector<8x16x128xf32>
    %91 = arith.mulf %86, %90 : vector<8x16x128xf32>
    %92 = arith.addf %85, %91 : vector<8x16x128xf32>
    %c0_58 = arith.constant 0 : index
    %c0_59 = arith.constant 0 : index
    %93 = vector.load %arg6[%c0_58, %c0_59] : memref<1x128xf32, #tpu.memory_space<vmem>>, vector<1x128xf32>
    %94 = vector.shape_cast %93 : vector<1x128xf32> to vector<128xf32>
    %95 = vector.shape_cast %94 : vector<128xf32> to vector<1x1x128xf32>
    %96 = vector.broadcast %95 : vector<1x1x128xf32> to vector<8x16x128xf32>
    %97 = arith.addf %92, %96 : vector<8x16x128xf32>
    %cst_60 = arith.constant 0.000000e+00 : f32
    %cst_61 = arith.constant 6.000000e+00 : f32
    %98 = vector.broadcast %cst_60 : f32 to vector<8x16x128xf32>
    %99 = arith.maximumf %98, %97 : vector<8x16x128xf32>
    %100 = vector.broadcast %cst_61 : f32 to vector<8x16x128xf32>
    %101 = arith.minimumf %100, %99 : vector<8x16x128xf32>
    %102 = vector.shape_cast %101 : vector<8x16x128xf32> to vector<128x128xf32>
    %103 = arith.truncf %102 : vector<128x128xf32> to vector<128x128xbf16>
    %c0_62 = arith.constant 0 : index
    %c0_63 = arith.constant 0 : index
    %104 = vector.load %arg7[%c0_62, %c0_63] : memref<128x8xbf16, #tpu.memory_space<vmem>>, vector<128x8xbf16>
    %cst_64 = arith.constant dense<0.000000e+00> : vector<128x8xf32>
    %105 = tpu.matmul %103, %104, %cst_64 {dimension_numbers = #tpu.dot_dimension_numbers<[1], [0], [0], [1], [0, 0, 1, 1], [], []>} : vector<128x128xbf16>, vector<128x8xbf16>, vector<128x8xf32> -> vector<128x8xf32>
    %c0_65 = arith.constant 0 : index
    %c0_66 = arith.constant 0 : index
    %106 = vector.load %arg9[%c0_65, %c0_66] : memref<1x8xf32, #tpu.memory_space<vmem>>, vector<1x8xf32>
    %107 = vector.broadcast %106 : vector<1x8xf32> to vector<128x8xf32>
    %108 = arith.addf %105, %107 : vector<128x8xf32>
    %c1_i32 = arith.constant 1 : i32
    %109 = arith.addi %1, %c1_i32 : i32
    %c0_67 = arith.constant 0 : index
    %110 = arith.index_cast %109 : i32 to index
    %c1_68 = arith.constant 1 : index
    %c0_69 = arith.constant 0 : index
    %111 = vector.load %arg2[%c0_67, %110, %c1_68, %c0_69] : memref<1x18x18x4xf32, #tpu.memory_space<vmem>>, vector<1x8x16x4xf32>
    %112 = vector.shape_cast %111 : vector<1x8x16x4xf32> to vector<8x16x4xf32>
    %113 = vector.shape_cast %112 : vector<8x16x4xf32> to vector<128x4xf32>
    %114 = arith.truncf %113 : vector<128x4xf32> to vector<128x4xbf16>
    %c0_70 = arith.constant 0 : index
    %c0_71 = arith.constant 0 : index
    %115 = vector.load %arg8[%c0_70, %c0_71] : memref<4x8xbf16, #tpu.memory_space<vmem>>, vector<4x8xbf16>
    %cst_72 = arith.constant dense<0.000000e+00> : vector<128x8xf32>
    %116 = tpu.matmul %114, %115, %cst_72 {dimension_numbers = #tpu.dot_dimension_numbers<[1], [0], [0], [1], [0, 0, 1, 1], [], []>} : vector<128x4xbf16>, vector<4x8xbf16>, vector<128x8xf32> -> vector<128x8xf32>
    %117 = arith.addf %108, %116 : vector<128x8xf32>
    %c0_73 = arith.constant 0 : index
    %c0_74 = arith.constant 0 : index
    %c0_75 = arith.constant 0 : index
    %118 = vector.load %arg10[%c0_73, %c0_74, %c0_75] : memref<1x128x8xf32, #tpu.memory_space<vmem>>, vector<1x128x8xf32>
    %119 = vector.shape_cast %118 : vector<1x128x8xf32> to vector<128x8xf32>
    %120 = vector.shape_cast %117 : vector<128x8xf32> to vector<1x128x8xf32>
    tpu.vector_store %arg10[%c0_73, %c0_74, %c0_75], %120 {strides = array<i32>} : memref<1x128x8xf32, #tpu.memory_space<vmem>>, vector<1x128x8xf32>,
    return
  }
  func.func @transform_0(%arg0: i32, %arg1: i32) -> (i32, i32, i32, i32) {
    %c0_i32 = arith.constant 0 : i32
    %c0_i32_0 = arith.constant 0 : i32
    %c0_i32_1 = arith.constant 0 : i32
    %c0_i32_2 = arith.constant 0 : i32
    return %arg0, %c0_i32, %c0_i32_0, %c0_i32_1 : i32, i32, i32, i32
  }
  func.func @transform_1(%arg0: i32, %arg1: i32) -> (i32, i32) {
    %c0_i32 = arith.constant 0 : i32
    %c0_i32_0 = arith.constant 0 : i32
    %c0_i32_1 = arith.constant 0 : i32
    return %c0_i32, %c0_i32_0 : i32, i32
  }
  func.func @transform_2(%arg0: i32, %arg1: i32) -> (i32, i32) {
    %c0_i32 = arith.constant 0 : i32
    %c0_i32_0 = arith.constant 0 : i32
    %c0_i32_1 = arith.constant 0 : i32
    return %c0_i32, %c0_i32_0 : i32, i32
  }
  func.func @transform_3(%arg0: i32, %arg1: i32) -> (i32, i32) {
    %c0_i32 = arith.constant 0 : i32
    %c0_i32_0 = arith.constant 0 : i32
    %c0_i32_1 = arith.constant 0 : i32
    return %c0_i32, %c0_i32_0 : i32, i32
  }
  func.func @transform_4(%arg0: i32, %arg1: i32) -> (i32, i32) {
    %c0_i32 = arith.constant 0 : i32
    %c0_i32_0 = arith.constant 0 : i32
    %c0_i32_1 = arith.constant 0 : i32
    return %c0_i32, %c0_i32_0 : i32, i32
  }
  func.func @transform_5(%arg0: i32, %arg1: i32) -> (i32, i32) {
    %c0_i32 = arith.constant 0 : i32
    %c0_i32_0 = arith.constant 0 : i32
    %c0_i32_1 = arith.constant 0 : i32
    return %c0_i32, %c0_i32_0 : i32, i32
  }
  func.func @transform_6(%arg0: i32, %arg1: i32) -> (i32, i32) {
    %c0_i32 = arith.constant 0 : i32
    %c0_i32_0 = arith.constant 0 : i32
    %c0_i32_1 = arith.constant 0 : i32
    return %c0_i32, %c0_i32_0 : i32, i32
  }
  func.func @transform_7(%arg0: i32, %arg1: i32) -> (i32, i32) {
    %c0_i32 = arith.constant 0 : i32
    %c0_i32_0 = arith.constant 0 : i32
    %c0_i32_1 = arith.constant 0 : i32
    return %c0_i32, %c0_i32_0 : i32, i32
  }
  func.func @transform_8(%arg0: i32, %arg1: i32) -> (i32, i32, i32) {
    %c0_i32 = arith.constant 0 : i32
    %c0_i32_0 = arith.constant 0 : i32
    return %arg0, %arg1, %c0_i32 : i32, i32, i32
  }
}

</mosaic_0001>

<llo_original>
// kernel: tpu_custom_call.1
$region0: #{tpu_custom_call.1}
  #allocation0 [shape = 'u32[]', space=smem, size = 0x4, offset = 0x4, fixed_abs, tag = 'smem constant byte address 0x4 - core index']
  #allocation1 [shape = 'u32[72,128]{1,0:T(1,128)}', space=vmem, size = 0x9000, scoped, tag = 'internal scratch']
  #allocation2 [shape = 'f32[10,18,128]{2,1,0:T(8,128)}', space=vmem, size = 0x1e000, scoped, tag = 'scratch operand']
  %s0 = inlined_call_operand.vmem [shape: f32[2,18,18,4], index: 0, kind: input, shape index: {}]
  %s1 = inlined_call_operand.vmem [shape: bf16[4,128], index: 1, kind: input, shape index: {}]
  %s2 = inlined_call_operand.vmem [shape: f32[1,128], index: 2, kind: input, shape index: {}]
  %s3 = inlined_call_operand.vmem [shape: f32[9,128], index: 3, kind: input, shape index: {}]
  %s4 = inlined_call_operand.vmem [shape: f32[1,128], index: 4, kind: input, shape index: {}]
  %s5 = inlined_call_operand.vmem [shape: bf16[128,8], index: 5, kind: input, shape index: {}]
  %s6 = inlined_call_operand.vmem [shape: bf16[4,8], index: 6, kind: input, shape index: {}]
  %s7 = inlined_call_operand.vmem [shape: f32[1,8], index: 7, kind: input, shape index: {}]
  %s8 = inlined_call_operand.vmem [shape: f32[2,256,8], index: 8, kind: output, shape index: {}]
  %s9 = sld [smem:[#allocation0]]
  $region73: #{tpu_custom_call.1} parent=0
    _
  %s11 = ssub.s32 1, %s9
  %s12 = scalar_select 0, %s11, %s9
  loop: start=0, step=1, limit=6
  $region2: #{tpu_custom_call.1} parent=0 // loop_pre_header
    _
  $region3: #{tpu_custom_call.1} parent=0 // loop_header
    %s14 = sphi 0, %s18
    %p15 = scmp.ge.s32.totalorder %s14, 6
    %s21 = sphi 0, %s33
    %s22 = sphi 0, %s29
    %s23 = sphi 0, %s21
    %s24 = sphi 0, %s22
    %s25 = sphi 0, %s23
    %s26 = sphi 0, %s24
    %s36 = sphi 0, %s38
    %s39 = sphi 0, %s36
    %s40 = sphi 0, %s39
    %s56 = sphi 0, %s40
    %s60 = sphi 0, %s60
    %s62 = sphi 0, %s60
    %s63 = sphi 0, %s62
    %s77 = sphi 0, %s63
    %s81 = sphi 0, %s81
    %s83 = sphi 0, %s81
    %s84 = sphi 0, %s83
    %s98 = sphi 0, %s84
    %s102 = sphi 0, %s102
    %s104 = sphi 0, %s102
    %s105 = sphi 0, %s104
    %s119 = sphi 0, %s105
    %s123 = sphi 0, %s123
    %s125 = sphi 0, %s123
    %s126 = sphi 0, %s125
    %s140 = sphi 0, %s126
    %s144 = sphi 0, %s144
    %s146 = sphi 0, %s144
    %s147 = sphi 0, %s146
    %s161 = sphi 0, %s147
    %s165 = sphi 0, %s165
    %s167 = sphi 0, %s165
    %s168 = sphi 0, %s167
    %s182 = sphi 0, %s168
    %s186 = sphi 0, %s186
    %s188 = sphi 0, %s186
    %s189 = sphi 0, %s188
    %s203 = sphi 0, %s189
    %s211 = sphi 0, %s213
    %s214 = sphi 0, %s211
    %s215 = sphi 0, %s214
    %s231 = sphi 0, %s215
  $region4: #{tpu_custom_call.1} parent=0 // loop_header_branch
    %17 = sbr.rel (%p15) target = $region8
  $region5: #{tpu_custom_call.1} parent=0 // loop_body
    %s19 = ssub.s32 %s14, 1
    %s20 = ssub.s32 %s14, 2
    %s27 = sadd.s32 1, %s22
    %p28 = scmp.ge.s32.totalorder %s27, 2
    %s29 = scalar_select %p28, 0, %s27
    %s30 = sadd.s32 1, %s21
    %s31 = scalar_select %p28, %s30, %s21
    %p32 = scmp.ge.s32.totalorder %s31, 2
    %s33 = scalar_select %p32, 0, %s31
    %s34 = ssub.s32 %s21, %s33
    %p35 = scmp.eq.s32.totalorder %s34, 0
    %s37 = sadd.s32 %s36, 1
    %s38 = scalar_select %p35, %s36, %s37
    %p41 = pneg %p35
    %p42 = scmp.eq.s32.totalorder %s14, 3
    %p43 = por %p41, %p42
    %p44 = scmp.ne.s32.totalorder %s36, %s39
    %p45 = scmp.eq.s32.totalorder %s14, 0
    %p46 = por %p44, %p45
    %p47 = scmp.ne.s32.totalorder %s36, %s39
    %p48 = scmp.eq.s32.totalorder %s19, 3
    %p49 = por %p47, %p48
    %p50 = scmp.ne.s32.totalorder %s39, %s40
    %p51 = scmp.eq.s32.totalorder %s19, 0
    %p52 = por %p50, %p51
    %p53 = scmp.ne.s32.totalorder %s39, %s40
    %p54 = scmp.eq.s32.totalorder %s20, 3
    %p55 = por %p53, %p54
    %p57 = scmp.ne.s32.totalorder %s40, %s56
    %p58 = scmp.eq.s32.totalorder %s20, 0
    %p59 = por %p57, %p58
    %s61 = sadd.s32 %s60, 1
    %p64 = scmp.eq.s32.totalorder %s14, 3
    %p65 = scmp.ne.s32.totalorder %s60, %s62
    %p66 = scmp.eq.s32.totalorder %s14, 0
    %p67 = por %p65, %p66
    %p68 = scmp.ne.s32.totalorder %s60, %s62
    %p69 = scmp.eq.s32.totalorder %s19, 3
    %p70 = por %p68, %p69
    %p71 = scmp.ne.s32.totalorder %s62, %s63
    %p72 = scmp.eq.s32.totalorder %s19, 0
    %p73 = por %p71, %p72
    %p74 = scmp.ne.s32.totalorder %s62, %s63
    %p75 = scmp.eq.s32.totalorder %s20, 3
    %p76 = por %p74, %p75
    %p78 = scmp.ne.s32.totalorder %s63, %s77
    %p79 = scmp.eq.s32.totalorder %s20, 0
    %p80 = por %p78, %p79
    %s82 = sadd.s32 %s81, 1
    %p85 = scmp.eq.s32.totalorder %s14, 3
    %p86 = scmp.ne.s32.totalorder %s81, %s83
    %p87 = scmp.eq.s32.totalorder %s14, 0
    %p88 = por %p86, %p87
    %p89 = scmp.ne.s32.totalorder %s81, %s83
    %p90 = scmp.eq.s32.totalorder %s19, 3
    %p91 = por %p89, %p90
    %p92 = scmp.ne.s32.totalorder %s83, %s84
    %p93 = scmp.eq.s32.totalorder %s19, 0
    %p94 = por %p92, %p93
    %p95 = scmp.ne.s32.totalorder %s83, %s84
    %p96 = scmp.eq.s32.totalorder %s20, 3
    %p97 = por %p95, %p96
    %p99 = scmp.ne.s32.totalorder %s84, %s98
    %p100 = scmp.eq.s32.totalorder %s20, 0
    %p101 = por %p99, %p100
    %s103 = sadd.s32 %s102, 1
    %p106 = scmp.eq.s32.totalorder %s14, 3
    %p107 = scmp.ne.s32.totalorder %s102, %s104
    %p108 = scmp.eq.s32.totalorder %s14, 0
    %p109 = por %p107, %p108
    %p110 = scmp.ne.s32.totalorder %s102, %s104
    %p111 = scmp.eq.s32.totalorder %s19, 3
    %p112 = por %p110, %p111
    %p113 = scmp.ne.s32.totalorder %s104, %s105
    %p114 = scmp.eq.s32.totalorder %s19, 0
    %p115 = por %p113, %p114
    %p116 = scmp.ne.s32.totalorder %s104, %s105
    %p117 = scmp.eq.s32.totalorder %s20, 3
    %p118 = por %p116, %p117
    %p120 = scmp.ne.s32.totalorder %s105, %s119
    %p121 = scmp.eq.s32.totalorder %s20, 0
    %p122 = por %p120, %p121
    %s124 = sadd.s32 %s123, 1
    %p127 = scmp.eq.s32.totalorder %s14, 3
    %p128 = scmp.ne.s32.totalorder %s123, %s125
    %p129 = scmp.eq.s32.totalorder %s14, 0
    %p130 = por %p128, %p129
    %p131 = scmp.ne.s32.totalorder %s123, %s125
    %p132 = scmp.eq.s32.totalorder %s19, 3
    %p133 = por %p131, %p132
    %p134 = scmp.ne.s32.totalorder %s125, %s126
    %p135 = scmp.eq.s32.totalorder %s19, 0
    %p136 = por %p134, %p135
    %p137 = scmp.ne.s32.totalorder %s125, %s126
    %p138 = scmp.eq.s32.totalorder %s20, 3
    %p139 = por %p137, %p138
    %p141 = scmp.ne.s32.totalorder %s126, %s140
    %p142 = scmp.eq.s32.totalorder %s20, 0
    %p143 = por %p141, %p142
    %s145 = sadd.s32 %s144, 1
    %p148 = scmp.eq.s32.totalorder %s14, 3
    %p149 = scmp.ne.s32.totalorder %s144, %s146
    %p150 = scmp.eq.s32.totalorder %s14, 0
    %p151 = por %p149, %p150
    %p152 = scmp.ne.s32.totalorder %s144, %s146
    %p153 = scmp.eq.s32.totalorder %s19, 3
    %p154 = por %p152, %p153
    %p155 = scmp.ne.s32.totalorder %s146, %s147
    %p156 = scmp.eq.s32.totalorder %s19, 0
    %p157 = por %p155, %p156
    %p158 = scmp.ne.s32.totalorder %s146, %s147
    %p159 = scmp.eq.s32.totalorder %s20, 3
    %p160 = por %p158, %p159
    %p162 = scmp.ne.s32.totalorder %s147, %s161
    %p163 = scmp.eq.s32.totalorder %s20, 0
    %p164 = por %p162, %p163
    %s166 = sadd.s32 %s165, 1
    %p169 = scmp.eq.s32.totalorder %s14, 3
    %p170 = scmp.ne.s32.totalorder %s165, %s167
    %p171 = scmp.eq.s32.totalorder %s14, 0
    %p172 = por %p170, %p171
    %p173 = scmp.ne.s32.totalorder %s165, %s167
    %p174 = scmp.eq.s32.totalorder %s19, 3
    %p175 = por %p173, %p174
    %p176 = scmp.ne.s32.totalorder %s167, %s168
    %p177 = scmp.eq.s32.totalorder %s19, 0
    %p178 = por %p176, %p177
    %p179 = scmp.ne.s32.totalorder %s167, %s168
    %p180 = scmp.eq.s32.totalorder %s20, 3
    %p181 = por %p179, %p180
    %p183 = scmp.ne.s32.totalorder %s168, %s182
    %p184 = scmp.eq.s32.totalorder %s20, 0
    %p185 = por %p183, %p184
    %s187 = sadd.s32 %s186, 1
    %p190 = scmp.eq.s32.totalorder %s14, 3
    %p191 = scmp.ne.s32.totalorder %s186, %s188
    %p192 = scmp.eq.s32.totalorder %s14, 0
    %p193 = por %p191, %p192
    %p194 = scmp.ne.s32.totalorder %s186, %s188
    %p195 = scmp.eq.s32.totalorder %s19, 3
    %p196 = por %p194, %p195
    %p197 = scmp.ne.s32.totalorder %s188, %s189
    %p198 = scmp.eq.s32.totalorder %s19, 0
    %p199 = por %p197, %p198
    %p200 = scmp.ne.s32.totalorder %s188, %s189
    %p201 = scmp.eq.s32.totalorder %s20, 3
    %p202 = por %p200, %p201
    %p204 = scmp.ne.s32.totalorder %s189, %s203
    %p205 = scmp.eq.s32.totalorder %s20, 0
    %p206 = por %p204, %p205
    %s207 = ssub.s32 %s21, %s33
    %s208 = ssub.s32 %s22, %s29
    %s209 = sor.u32 %s207, %s208
    %p210 = scmp.eq.s32.totalorder %s209, 0
    %s212 = sadd.s32 %s211, 1
    %s213 = scalar_select %p210, %s211, %s212
    %p216 = pneg %p210
    %p217 = scmp.eq.s32.totalorder %s14, 3
    %p218 = por %p216, %p217
    %p219 = scmp.ne.s32.totalorder %s211, %s214
    %p220 = scmp.eq.s32.totalorder %s14, 0
    %p221 = por %p219, %p220
    %p222 = scmp.ne.s32.totalorder %s211, %s214
    %p223 = scmp.eq.s32.totalorder %s19, 3
    %p224 = por %p222, %p223
    %p225 = scmp.ne.s32.totalorder %s214, %s215
    %p226 = scmp.eq.s32.totalorder %s19, 0
    %p227 = por %p225, %p226
    %p228 = scmp.ne.s32.totalorder %s214, %s215
    %p229 = scmp.eq.s32.totalorder %s20, 3
    %p230 = por %p228, %p229
    %p232 = scmp.ne.s32.totalorder %s215, %s231
    %p233 = scmp.eq.s32.totalorder %s20, 0
    %p234 = por %p232, %p233
    %p235 = scmp.le.s32.totalorder 1, %s14
    %p236 = scmp.lt.s32.totalorder %s14, 5
    %p237 = pnand %p235, %p236
    %p238 = pneg %p237
    // Predicated region
    $region9: #{tpu_custom_call.1} parent=5 // pred_check
      _
    $region10: #{tpu_custom_call.1} parent=5 // pred_check_branch
      %240 = sbr.rel (%p237) target = $region12
    $region11: #{tpu_custom_call.1} parent=5 // pred_region
      %s241 = ssub.s32 %s14, 1
      // Predicated region
      $region13: #{tpu_custom_call.1} parent=11 // pred_check
        %p242 = pneg %p73
      $region14: #{tpu_custom_call.1} parent=11 // pred_check_branch
        %244 = sbr.rel (%p242) target = $region16
      $region15: #{tpu_custom_call.1} parent=11 // pred_region
        _
      $region16: #{tpu_custom_call.1} parent=11 // pred_fallthru
        _
      // Predicated region
      $region17: #{tpu_custom_call.1} parent=11 // pred_check
        %p245 = pneg %p94
      $region18: #{tpu_custom_call.1} parent=11 // pred_check_branch
        %247 = sbr.rel (%p245) target = $region20
      $region19: #{tpu_custom_call.1} parent=11 // pred_region
        _
      $region20: #{tpu_custom_call.1} parent=11 // pred_fallthru
        _
      // Predicated region
      $region21: #{tpu_custom_call.1} parent=11 // pred_check
        %p248 = pneg %p115
      $region22: #{tpu_custom_call.1} parent=11 // pred_check_branch
        %250 = sbr.rel (%p248) target = $region24
      $region23: #{tpu_custom_call.1} parent=11 // pred_region
        _
      $region24: #{tpu_custom_call.1} parent=11 // pred_fallthru
        _
      // Predicated region
      $region25: #{tpu_custom_call.1} parent=11 // pred_check
        %p251 = pneg %p136
      $region26: #{tpu_custom_call.1} parent=11 // pred_check_branch
        %253 = sbr.rel (%p251) target = $region28
      $region27: #{tpu_custom_call.1} parent=11 // pred_region
        _
      $region28: #{tpu_custom_call.1} parent=11 // pred_fallthru
        _
      // Predicated region
      $region29: #{tpu_custom_call.1} parent=11 // pred_check
        %p254 = pneg %p157
      $region30: #{tpu_custom_call.1} parent=11 // pred_check_branch
        %256 = sbr.rel (%p254) target = $region32
      $region31: #{tpu_custom_call.1} parent=11 // pred_region
        _
      $region32: #{tpu_custom_call.1} parent=11 // pred_fallthru
        _
      // Predicated region
      $region33: #{tpu_custom_call.1} parent=11 // pred_check
        %p257 = pneg %p178
      $region34: #{tpu_custom_call.1} parent=11 // pred_check_branch
        %259 = sbr.rel (%p257) target = $region36
      $region35: #{tpu_custom_call.1} parent=11 // pred_region
        _
      $region36: #{tpu_custom_call.1} parent=11 // pred_fallthru
        _
      // Predicated region
      $region37: #{tpu_custom_call.1} parent=11 // pred_check
        %p260 = pneg %p199
      $region38: #{tpu_custom_call.1} parent=11 // pred_check_branch
        %262 = sbr.rel (%p260) target = $region40
      $region39: #{tpu_custom_call.1} parent=11 // pred_region
        _
      $region40: #{tpu_custom_call.1} parent=11 // pred_fallthru
        _
    $region12: #{tpu_custom_call.1} parent=5 // pred_fallthru
      _
    %p263 = scmp.lt.s32.totalorder %s14, 4
    // Predicated region
    $region41: #{tpu_custom_call.1} parent=5 // pred_check
      %p264 = pneg %p263
    $region42: #{tpu_custom_call.1} parent=5 // pred_check_branch
      %266 = sbr.rel (%p264) target = $region44
    $region43: #{tpu_custom_call.1} parent=5 // pred_region
      // Predicated region
      $region45: #{tpu_custom_call.1} parent=43 // pred_check
        %p267 = pneg %p46
      $region46: #{tpu_custom_call.1} parent=43 // pred_check_branch
        %269 = sbr.rel (%p267) target = $region48
      $region47: #{tpu_custom_call.1} parent=43 // pred_region
        %p270 = scmp.lt.s32.totalorder %s21, 1
        %s271 = scalar_select %p270, %s21, 1
        %s272 = smul.addr %s271, 54
        %s273 = smul.addr %s272, 8
        %s274 = scalar_lea.vmem %s0, %s273
      $region48: #{tpu_custom_call.1} parent=43 // pred_fallthru
        _
    $region44: #{tpu_custom_call.1} parent=5 // pred_fallthru
      _
    %p275 = scmp.le.s32.totalorder 1, %s14
    %p276 = scmp.lt.s32.totalorder %s14, 5
    %p277 = pnand %p275, %p276
    %p278 = pneg %p277
    // Predicated region
    $region49: #{tpu_custom_call.1} parent=5 // pred_check
      _
    $region50: #{tpu_custom_call.1} parent=5 // pred_check_branch
      %280 = sbr.rel (%p277) target = $region52
    $region51: #{tpu_custom_call.1} parent=5 // pred_region
      %s281 = ssub.s32 %s14, 1
      %p282 = scmp.lt.s32.totalorder %s23, 1
      %s283 = scalar_select %p282, %s23, 1
      %s284 = smul.addr %s283, 54
      %s285 = smul.addr %s284, 8
      %s286 = scalar_lea.vmem %s0, %s285
      %p287 = pneg %p52
      %p288 = pneg %p49
      %p289 = pneg %p73
      %p290 = pneg %p70
      %p291 = pneg %p94
      %p292 = pneg %p91
      %p293 = pneg %p115
      %p294 = pneg %p112
      %p295 = pneg %p136
      %p296 = pneg %p133
      %p297 = pneg %p157
      %p298 = pneg %p154
      %p299 = pneg %p178
      %p300 = pneg %p175
      %p301 = pneg %p199
      %p302 = pneg %p196
      %p303 = pneg %p227
      %p304 = pneg %p224
      %s305 = smul.u32 16, %s24
      %p306 = scmp.lt.s32.totalorder %s23, 1
      %s307 = scalar_select %p306, %s23, 1
      %p308 = scmp.lt.s32.totalorder %s305, 31
      %s309 = scalar_select %p308, %s305, 31
      %s310 = smul.addr %s307, 32
      %s311 = sadd.s32 %s309, %s310
      %s312 = smul.addr %s311, 8
      %s313 = scalar_lea.vmem %s8, %s312
      %p314 = scmp.lt.s32.totalorder %s23, 1
      %s315 = scalar_select %p314, %s23, 1
      %s316 = smul.addr %s315, 54
      %s317 = smul.addr %s316, 8
      %s318 = scalar_lea.vmem %s0, %s317
      %s319 = smul.u32 16, %s24
      %p320 = scmp.lt.s32.totalorder %s23, 1
      %s321 = scalar_select %p320, %s23, 1
      %p322 = scmp.lt.s32.totalorder %s319, 31
      %s323 = scalar_select %p322, %s319, 31
      %s324 = smul.addr %s321, 32
      %s325 = sadd.s32 %s323, %s324
      %s326 = smul.addr %s325, 8
      %s327 = scalar_lea.vmem %s8, %s326
      %s328 = smul.u32 16, %s24
      %s330 = smul.u32 %s24, 8
      %s331 = smul.u32 %s330, 24
      %s332 = scalar_lea.vmem %s318, %s331
      %v333 = vld [vmem:[%s332] sm:$0xff]
      %v334 = vld [vmem:[%s332 + $0x8] sm:$0xff]
      %v335 = vld [vmem:[%s332 + $0x10] sm:$0x3]
      %v336 = vld [vmem:[%s332 + $0x18] sm:$0xff]
      %v337 = vld [vmem:[%s332 + $0x20] sm:$0xff]
      %v338 = vld [vmem:[%s332 + $0x28] sm:$0x3]
      %v339 = vld [vmem:[%s332 + $0x30] sm:$0xff]
      %v340 = vld [vmem:[%s332 + $0x38] sm:$0xff]
      %v341 = vld [vmem:[%s332 + $0x40] sm:$0x3]
      %v342 = vld [vmem:[%s332 + $0x48] sm:$0xff]
      %v343 = vld [vmem:[%s332 + $0x50] sm:$0xff]
      %v344 = vld [vmem:[%s332 + $0x58] sm:$0x3]
      %v345 = vld [vmem:[%s332 + $0x60] sm:$0xff]
      %v346 = vld [vmem:[%s332 + $0x68] sm:$0xff]
      %v347 = vld [vmem:[%s332 + $0x70] sm:$0x3]
      %v348 = vld [vmem:[%s332 + $0x78] sm:$0xff]
      %v349 = vld [vmem:[%s332 + $0x80] sm:$0xff]
      %v350 = vld [vmem:[%s332 + $0x88] sm:$0x3]
      %v351 = vld [vmem:[%s332 + $0x90] sm:$0xff]
      %v352 = vld [vmem:[%s332 + $0x98] sm:$0xff]
      %v353 = vld [vmem:[%s332 + $0xa0] sm:$0x3]
      %v354 = vld [vmem:[%s332 + $0xa8] sm:$0xff]
      %v355 = vld [vmem:[%s332 + $0xb0] sm:$0xff]
      %v356 = vld [vmem:[%s332 + $0xb8] sm:$0x3]
      %v357 = vld [vmem:[%s332 + $0xc0] sm:$0xff]
      %v358 = vld [vmem:[%s332 + $0xc8] sm:$0xff]
      %v359 = vld [vmem:[%s332 + $0xd0] sm:$0x3]
      %v360 = vld [vmem:[%s332 + $0xd8] sm:$0xff]
      %v361 = vld [vmem:[%s332 + $0xe0] sm:$0xff]
      %v362 = vld [vmem:[%s332 + $0xe8] sm:$0x3]
      %v393 = vrot.slane %v333, 2
      %v394 = vrot.slane %v333, 4
      %v395 = vrot.slane %v333, 6
      %v396 = vrot.slane %v334, 2
      %v397 = vrot.slane %v334, 4
      %v398 = vrot.slane %v334, 6
      %v399 = vrot.slane %v336, 2
      %v400 = vrot.slane %v336, 4
      %v401 = vrot.slane %v336, 6
      %v402 = vrot.slane %v337, 2
      %v403 = vrot.slane %v337, 4
      %v404 = vrot.slane %v337, 6
      %v405 = vrot.slane %v339, 2
      %v406 = vrot.slane %v339, 4
      %v407 = vrot.slane %v339, 6
      %v408 = vrot.slane %v340, 2
      %v409 = vrot.slane %v340, 4
      %v410 = vrot.slane %v340, 6
      %v411 = vrot.slane %v342, 2
      %v412 = vrot.slane %v342, 4
      %v413 = vrot.slane %v342, 6
      %v414 = vrot.slane %v343, 2
      %v415 = vrot.slane %v343, 4
      %v416 = vrot.slane %v343, 6
      %v417 = vrot.slane %v345, 2
      %v418 = vrot.slane %v345, 4
      %v419 = vrot.slane %v345, 6
      %v420 = vrot.slane %v346, 2
      %v421 = vrot.slane %v346, 4
      %v422 = vrot.slane %v346, 6
      %v423 = vrot.slane %v348, 2
      %v424 = vrot.slane %v348, 4
      %v425 = vrot.slane %v348, 6
      %v426 = vrot.slane %v349, 2
      %v427 = vrot.slane %v349, 4
      %v428 = vrot.slane %v349, 6
      %v429 = vrot.slane %v351, 2
      %v430 = vrot.slane %v351, 4
      %v431 = vrot.slane %v351, 6
      %v432 = vrot.slane %v352, 2
      %v433 = vrot.slane %v352, 4
      %v434 = vrot.slane %v352, 6
      %v435 = vrot.slane %v354, 2
      %v436 = vrot.slane %v354, 4
      %v437 = vrot.slane %v354, 6
      %v438 = vrot.slane %v355, 2
      %v439 = vrot.slane %v355, 4
      %v440 = vrot.slane %v355, 6
      %v441 = vrot.slane %v357, 2
      %v442 = vrot.slane %v357, 4
      %v443 = vrot.slane %v357, 6
      %v444 = vrot.slane %v358, 2
      %v445 = vrot.slane %v358, 4
      %v446 = vrot.slane %v358, 6
      %v447 = vrot.slane %v360, 2
      %v448 = vrot.slane %v360, 4
      %v449 = vrot.slane %v360, 6
      %v450 = vrot.slane %v361, 2
      %v451 = vrot.slane %v361, 4
      %v452 = vrot.slane %v361, 6
      %453 = vst [vmem:[#allocation1] ss:$4 sm:$0xff] %v333
      %s454 = scalar_lea.vmem [#allocation1], 1
      %455 = vst [vmem:[%s454] ss:$4 sm:$0xff] %v393
      %s456 = scalar_lea.vmem [#allocation1], 2
      %457 = vst [vmem:[%s456] ss:$4 sm:$0xff] %v394
      %s458 = scalar_lea.vmem [#allocation1], 3
      %459 = vst [vmem:[%s458] ss:$4 sm:$0xff] %v395
      %s460 = scalar_lea.vmem [#allocation1], 32
      %461 = vst [vmem:[%s460] ss:$4 sm:$0xff] %v334
      %s462 = scalar_lea.vmem [#allocation1], 33
      %463 = vst [vmem:[%s462] ss:$4 sm:$0xff] %v396
      %s464 = scalar_lea.vmem [#allocation1], 34
      %465 = vst [vmem:[%s464] ss:$4 sm:$0xff] %v397
      %s466 = scalar_lea.vmem [#allocation1], 35
      %467 = vst [vmem:[%s466] ss:$4 sm:$0xff] %v398
      %v468 = vld.sshfl [vmem:[#allocation1] sm:$0xff pattern:$0x73625140]
      %v469 = vld.sshfl [vmem:[#allocation1 + $0x20] sm:$0xff pattern:$0x73625140]
      %470 = vst [vmem:[#allocation1] ss:$4 sm:$0xff] %v335
      %471 = vst [vmem:[%s454] ss:$4 sm:$0xff] %v336
      %472 = vst [vmem:[%s456] ss:$4 sm:$0xff] %v399
      %473 = vst [vmem:[%s458] ss:$4 sm:$0xff] %v400
      %474 = vst [vmem:[%s460] ss:$4 sm:$0xff] %v401
      %475 = vst [vmem:[%s462] ss:$4 sm:$0xff] %v337
      %476 = vst [vmem:[%s464] ss:$4 sm:$0xff] %v402
      %477 = vst [vmem:[%s466] ss:$4 sm:$0xff] %v403
      %v478 = vld.sshfl [vmem:[#allocation1] sm:$0xff pattern:$0x73625140]
      %v479 = vld.sshfl [vmem:[#allocation1 + $0x20] sm:$0xff pattern:$0x73625140]
      %480 = vst [vmem:[#allocation1] ss:$4 sm:$0xff] %v404
      %481 = vst [vmem:[%s454] ss:$4 sm:$0xff] %v338
      %482 = vst [vmem:[%s456] ss:$4 sm:$0xff] %v339
      %483 = vst [vmem:[%s458] ss:$4 sm:$0xff] %v405
      %484 = vst [vmem:[%s460] ss:$4 sm:$0xff] %v406
      %485 = vst [vmem:[%s462] ss:$4 sm:$0xff] %v407
      %486 = vst [vmem:[%s464] ss:$4 sm:$0xff] %v340
      %487 = vst [vmem:[%s466] ss:$4 sm:$0xff] %v408
      %v488 = vld.sshfl [vmem:[#allocation1] sm:$0xff pattern:$0x73625140]
      %v489 = vld.sshfl [vmem:[#allocation1 + $0x20] sm:$0xff pattern:$0x73625140]
      %490 = vst [vmem:[#allocation1] ss:$4 sm:$0xff] %v409
      %491 = vst [vmem:[%s454] ss:$4 sm:$0xff] %v410
      %492 = vst [vmem:[%s456] ss:$4 sm:$0xff] %v341
      %493 = vst [vmem:[%s458] ss:$4 sm:$0xff] %v342
      %494 = vst [vmem:[%s460] ss:$4 sm:$0xff] %v411
      %495 = vst [vmem:[%s462] ss:$4 sm:$0xff] %v412
      %496 = vst [vmem:[%s464] ss:$4 sm:$0xff] %v413
      %497 = vst [vmem:[%s466] ss:$4 sm:$0xff] %v343
      %v498 = vld.sshfl [vmem:[#allocation1] sm:$0xff pattern:$0x73625140]
      %v499 = vld.sshfl [vmem:[#allocation1 + $0x20] sm:$0xff pattern:$0x73625140]
      %500 = vst [vmem:[#allocation1] ss:$4 sm:$0xff] %v414
      %501 = vst [vmem:[%s454] ss:$4 sm:$0xff] %v415
      %502 = vst [vmem:[%s456] ss:$4 sm:$0xff] %v416
      %503 = vst [vmem:[%s458] ss:$4 sm:$0xff] %v344
      %504 = vst [vmem:[%s460] ss:$4 sm:$0xff] %v345
      %505 = vst [vmem:[%s462] ss:$4 sm:$0xff] %v417
      %506 = vst [vmem:[%s464] ss:$4 sm:$0xff] %v418
      %507 = vst [vmem:[%s466] ss:$4 sm:$0xff] %v419
      %v508 = vld.sshfl [vmem:[#allocation1] sm:$0xff pattern:$0x73625140]
      %v509 = vld.sshfl [vmem:[#allocation1 + $0x20] sm:$0xff pattern:$0x73625140]
      %510 = vst [vmem:[#allocation1] ss:$4 sm:$0xff] %v346
      %511 = vst [vmem:[%s454] ss:$4 sm:$0xff] %v420
      %512 = vst [vmem:[%s456] ss:$4 sm:$0xff] %v421
      %513 = vst [vmem:[%s458] ss:$4 sm:$0xff] %v422
      %514 = vst [vmem:[%s460] ss:$4 sm:$0xff] %v347
      %515 = vst [vmem:[%s462] ss:$4 sm:$0xff] %v348
      %516 = vst [vmem:[%s464] ss:$4 sm:$0xff] %v423
      %517 = vst [vmem:[%s466] ss:$4 sm:$0xff] %v424
      %v518 = vld.sshfl [vmem:[#allocation1] sm:$0xff pattern:$0x73625140]
      %v519 = vld.sshfl [vmem:[#allocation1 + $0x20] sm:$0xff pattern:$0x73625140]
      %520 = vst [vmem:[#allocation1] ss:$4 sm:$0xff] %v425
      %521 = vst [vmem:[%s454] ss:$4 sm:$0xff] %v349
      %522 = vst [vmem:[%s456] ss:$4 sm:$0xff] %v426
      %523 = vst [vmem:[%s458] ss:$4 sm:$0xff] %v427
      %524 = vst [vmem:[%s460] ss:$4 sm:$0xff] %v428
      %525 = vst [vmem:[%s462] ss:$4 sm:$0xff] %v350
      %526 = vst [vmem:[%s464] ss:$4 sm:$0xff] %v351
      %527 = vst [vmem:[%s466] ss:$4 sm:$0xff] %v429
      %v528 = vld.sshfl [vmem:[#allocation1] sm:$0xff pattern:$0x73625140]
      %v529 = vld.sshfl [vmem:[#allocation1 + $0x20] sm:$0xff pattern:$0x73625140]
      %530 = vst [vmem:[#allocation1] ss:$4 sm:$0xff] %v430
      %531 = vst [vmem:[%s454] ss:$4 sm:$0xff] %v431
      %532 = vst [vmem:[%s456] ss:$4 sm:$0xff] %v352
      %533 = vst [vmem:[%s458] ss:$4 sm:$0xff] %v432
      %534 = vst [vmem:[%s460] ss:$4 sm:$0xff] %v433
      %535 = vst [vmem:[%s462] ss:$4 sm:$0xff] %v434
      %536 = vst [vmem:[%s464] ss:$4 sm:$0xff] %v353
      %537 = vst [vmem:[%s466] ss:$4 sm:$0xff] %v354
      %v538 = vld.sshfl [vmem:[#allocation1] sm:$0xff pattern:$0x73625140]
      %v539 = vld.sshfl [vmem:[#allocation1 + $0x20] sm:$0xff pattern:$0x73625140]
      %540 = vst [vmem:[#allocation1] ss:$4 sm:$0xff] %v435
      %541 = vst [vmem:[%s454] ss:$4 sm:$0xff] %v436
      %542 = vst [vmem:[%s456] ss:$4 sm:$0xff] %v437
      %543 = vst [vmem:[%s458] ss:$4 sm:$0xff] %v355
      %544 = vst [vmem:[%s460] ss:$4 sm:$0xff] %v438
      %545 = vst [vmem:[%s462] ss:$4 sm:$0xff] %v439
      %546 = vst [vmem:[%s464] ss:$4 sm:$0xff] %v440
      %547 = vst [vmem:[%s466] ss:$4 sm:$0xff] %v356
      %v548 = vld.sshfl [vmem:[#allocation1] sm:$0xff pattern:$0x73625140]
      %v549 = vld.sshfl [vmem:[#allocation1 + $0x20] sm:$0xff pattern:$0x73625140]
      %550 = vst [vmem:[#allocation1] ss:$4 sm:$0xff] %v357
      %551 = vst [vmem:[%s454] ss:$4 sm:$0xff] %v441
      %552 = vst [vmem:[%s456] ss:$4 sm:$0xff] %v442
      %553 = vst [vmem:[%s458] ss:$4 sm:$0xff] %v443
      %554 = vst [vmem:[%s460] ss:$4 sm:$0xff] %v358
      %555 = vst [vmem:[%s462] ss:$4 sm:$0xff] %v444
      %556 = vst [vmem:[%s464] ss:$4 sm:$0xff] %v445
      %557 = vst [vmem:[%s466] ss:$4 sm:$0xff] %v446
      %v558 = vld.sshfl [vmem:[#allocation1] sm:$0xff pattern:$0x73625140]
      %v559 = vld.sshfl [vmem:[#allocation1 + $0x20] sm:$0xff pattern:$0x73625140]
      %560 = vst [vmem:[#allocation1] ss:$4 sm:$0xff] %v359
      %561 = vst [vmem:[%s454] ss:$4 sm:$0xff] %v360
      %562 = vst [vmem:[%s456] ss:$4 sm:$0xff] %v447
      %563 = vst [vmem:[%s458] ss:$4 sm:$0xff] %v448
      %564 = vst [vmem:[%s460] ss:$4 sm:$0xff] %v449
      %565 = vst [vmem:[%s462] ss:$4 sm:$0xff] %v361
      %566 = vst [vmem:[%s464] ss:$4 sm:$0xff] %v450
      %567 = vst [vmem:[%s466] ss:$4 sm:$0xff] %v451
      %v568 = vld.sshfl [vmem:[#allocation1] sm:$0xff pattern:$0x73625140]
      %v569 = vld.sshfl [vmem:[#allocation1 + $0x20] sm:$0xff pattern:$0x73625140]
      %570 = vst [vmem:[#allocation1] ss:$4 sm:$0xff] %v452
      %571 = vst [vmem:[%s454] ss:$4 sm:$0xff] %v362
      %v572 = vld.sshfl [vmem:[#allocation1] sm:$0xff pattern:$0x73625140]
      %v596 = vpack.c.bf16 %v469, %v468
      %v597 = vpack.c.bf16 %v479, %v478
      %v598 = vpack.c.bf16 %v489, %v488
      %v599 = vpack.c.bf16 %v499, %v498
      %v600 = vpack.c.bf16 %v509, %v508
      %v601 = vpack.c.bf16 %v519, %v518
      %v602 = vpack.c.bf16 %v529, %v528
      %v603 = vpack.c.bf16 %v539, %v538
      %v604 = vpack.c.bf16 %v549, %v548
      %v605 = vpack.c.bf16 %v559, %v558
      %v606 = vpack.c.bf16 %v569, %v568
      %v607 = vpack.c.bf16 %v572, %v572
      %v608 = vld [vmem:[%s1] sm:$0x3]
      %v609 = vld [vmem:[%s2] sm:$0x1]
      %v611 = vperm.slane %v609, 0
      %vm613 = vcmask 31744
      %v615 = vsel %vm613, %v596, 0
      %v618 = vsel %vm613, %v597, 0
      %v621 = vsel %vm613, %v598, 0
      %v624 = vsel %vm613, %v599, 0
      %v627 = vsel %vm613, %v600, 0
      %v630 = vsel %vm613, %v601, 0
      %v633 = vsel %vm613, %v602, 0
      %v636 = vsel %vm613, %v603, 0
      %v639 = vsel %vm613, %v604, 0
      %v642 = vsel %vm613, %v605, 0
      %v645 = vsel %vm613, %v606, 0
      %v648 = vsel %vm613, %v607, 0
      %vm650 = vcmask 1041408
      %v652 = vsel %vm650, %v608, 0
      %654 = vmatpush.bf16.msra.mxu0 0
      %655 = vmatpush.bf16.msra.mxu0 0
      %656 = vmatpush.bf16.msra.mxu0 0
      %657 = vmatpush.bf16.msra.mxu0 0
      %658 = vmatpush.bf16.msra.mxu0 0
      %659 = vmatpush.bf16.msra.mxu0 0
      %660 = vmatpush.bf16.msra.mxu0 0
      %661 = vmatpush.bf16.msra.mxu0 %v652
      %662 = vmatmul.bf16.gmra.mxu0 %v615
      %v663 = vpop.f32.mrf.mxu0
      %v664 = vadd.f32 %v611, %v663
      %v665 = vpop.f32.mrf.mxu0
      %v666 = vadd.f32 %v611, %v665
      %667 = vmatmul.bf16.gmra.mxu0 %v618
      %v668 = vpop.f32.mrf.mxu0
      %v669 = vadd.f32 %v611, %v668
      %v670 = vpop.f32.mrf.mxu0
      %v671 = vadd.f32 %v611, %v670
      %672 = vmatmul.bf16.gmra.mxu0 %v621
      %v673 = vpop.f32.mrf.mxu0
      %v674 = vadd.f32 %v611, %v673
      %v675 = vpop.f32.mrf.mxu0
      %v676 = vadd.f32 %v611, %v675
      %677 = vmatmul.bf16.gmra.mxu0 %v624
      %v678 = vpop.f32.mrf.mxu0
      %v679 = vadd.f32 %v611, %v678
      %v680 = vpop.f32.mrf.mxu0
      %v681 = vadd.f32 %v611, %v680
      %682 = vmatmul.bf16.gmra.mxu0 %v627
      %v683 = vpop.f32.mrf.mxu0
      %v684 = vadd.f32 %v611, %v683
      %v685 = vpop.f32.mrf.mxu0
      %v686 = vadd.f32 %v611, %v685
      %687 = vmatmul.bf16.gmra.mxu0 %v630
      %v688 = vpop.f32.mrf.mxu0
      %v689 = vadd.f32 %v611, %v688
      %v690 = vpop.f32.mrf.mxu0
      %v691 = vadd.f32 %v611, %v690
      %692 = vmatmul.bf16.gmra.mxu0 %v633
      %v693 = vpop.f32.mrf.mxu0
      %v694 = vadd.f32 %v611, %v693
      %v695 = vpop.f32.mrf.mxu0
      %v696 = vadd.f32 %v611, %v695
      %697 = vmatmul.bf16.gmra.mxu0 %v636
      %v698 = vpop.f32.mrf.mxu0
      %v699 = vadd.f32 %v611, %v698
      %v700 = vpop.f32.mrf.mxu0
      %v701 = vadd.f32 %v611, %v700
      %702 = vmatmul.bf16.gmra.mxu0 %v639
      %v703 = vpop.f32.mrf.mxu0
      %v704 = vadd.f32 %v611, %v703
      %v705 = vpop.f32.mrf.mxu0
      %v706 = vadd.f32 %v611, %v705
      %707 = vmatmul.bf16.gmra.mxu0 %v642
      %v708 = vpop.f32.mrf.mxu0
      %v709 = vadd.f32 %v611, %v708
      %v710 = vpop.f32.mrf.mxu0
      %v711 = vadd.f32 %v611, %v710
      %712 = vmatmul.bf16.gmra.mxu0 %v645
      %v713 = vpop.f32.mrf.mxu0
      %v714 = vadd.f32 %v611, %v713
      %v715 = vpop.f32.mrf.mxu0
      %v716 = vadd.f32 %v611, %v715
      %717 = vmatmul.bf16.gmra.mxu0 %v648
      %v718 = vpop.f32.mrf.mxu0
      %v719 = vadd.f32 %v611, %v718
      %v720 = vpop.f32.mrf.mxu0
      %721 = vdwg.mxu0
      %v722 = vmax.f32 %v664, 0.0
      %v723 = vmax.f32 %v666, 0.0
      %v724 = vmax.f32 %v669, 0.0
      %v725 = vmax.f32 %v671, 0.0
      %v726 = vmax.f32 %v674, 0.0
      %v727 = vmax.f32 %v676, 0.0
      %v728 = vmax.f32 %v679, 0.0
      %v729 = vmax.f32 %v681, 0.0
      %v730 = vmax.f32 %v684, 0.0
      %v731 = vmax.f32 %v686, 0.0
      %v732 = vmax.f32 %v689, 0.0
      %v733 = vmax.f32 %v691, 0.0
      %v734 = vmax.f32 %v694, 0.0
      %v735 = vmax.f32 %v696, 0.0
      %v736 = vmax.f32 %v699, 0.0
      %v737 = vmax.f32 %v701, 0.0
      %v738 = vmax.f32 %v704, 0.0
      %v739 = vmax.f32 %v706, 0.0
      %v740 = vmax.f32 %v709, 0.0
      %v741 = vmax.f32 %v711, 0.0
      %v742 = vmax.f32 %v714, 0.0
      %v743 = vmax.f32 %v716, 0.0
      %v744 = vmax.f32 %v719, 0.0
      %v745 = vmin.f32 %v722, 6.0
      %v746 = vmin.f32 %v723, 6.0
      %v747 = vmin.f32 %v724, 6.0
      %v748 = vmin.f32 %v725, 6.0
      %v749 = vmin.f32 %v726, 6.0
      %v750 = vmin.f32 %v727, 6.0
      %v751 = vmin.f32 %v728, 6.0
      %v752 = vmin.f32 %v729, 6.0
      %v753 = vmin.f32 %v730, 6.0
      %v754 = vmin.f32 %v731, 6.0
      %v755 = vmin.f32 %v732, 6.0
      %v756 = vmin.f32 %v733, 6.0
      %v757 = vmin.f32 %v734, 6.0
      %v758 = vmin.f32 %v735, 6.0
      %v759 = vmin.f32 %v736, 6.0
      %v760 = vmin.f32 %v737, 6.0
      %v761 = vmin.f32 %v738, 6.0
      %v762 = vmin.f32 %v739, 6.0
      %v763 = vmin.f32 %v740, 6.0
      %v764 = vmin.f32 %v741, 6.0
      %v765 = vmin.f32 %v742, 6.0
      %v766 = vmin.f32 %v743, 6.0
      %v767 = vmin.f32 %v744, 6.0
      %v791 = vrot.slane %v745, 2
      %v792 = vrot.slane %v745, 4
      %v793 = vrot.slane %v745, 6
      %v794 = vrot.slane %v746, 2
      %v795 = vrot.slane %v746, 4
      %v796 = vrot.slane %v746, 6
      %v797 = vrot.slane %v747, 2
      %v798 = vrot.slane %v747, 4
      %v799 = vrot.slane %v747, 6
      %v800 = vrot.slane %v748, 2
      %v801 = vrot.slane %v748, 4
      %v802 = vrot.slane %v748, 6
      %v803 = vrot.slane %v749, 2
      %v804 = vrot.slane %v749, 4
      %v805 = vrot.slane %v749, 6
      %v806 = vrot.slane %v750, 2
      %v807 = vrot.slane %v750, 4
      %v808 = vrot.slane %v750, 6
      %v809 = vrot.slane %v751, 2
      %v810 = vrot.slane %v751, 4
      %v811 = vrot.slane %v751, 6
      %v812 = vrot.slane %v752, 2
      %v813 = vrot.slane %v752, 4
      %v814 = vrot.slane %v752, 6
      %v815 = vrot.slane %v753, 2
      %v816 = vrot.slane %v753, 4
      %v817 = vrot.slane %v753, 6
      %v818 = vrot.slane %v754, 2
      %v819 = vrot.slane %v754, 4
      %v820 = vrot.slane %v754, 6
      %v821 = vrot.slane %v755, 2
      %v822 = vrot.slane %v755, 4
      %v823 = vrot.slane %v755, 6
      %v824 = vrot.slane %v756, 2
      %v825 = vrot.slane %v756, 4
      %v826 = vrot.slane %v756, 6
      %v827 = vrot.slane %v757, 2
      %v828 = vrot.slane %v757, 4
      %v829 = vrot.slane %v757, 6
      %v830 = vrot.slane %v758, 2
      %v831 = vrot.slane %v758, 4
      %v832 = vrot.slane %v758, 6
      %v833 = vrot.slane %v759, 2
      %v834 = vrot.slane %v759, 4
      %v835 = vrot.slane %v759, 6
      %v836 = vrot.slane %v760, 2
      %v837 = vrot.slane %v760, 4
      %v838 = vrot.slane %v760, 6
      %v839 = vrot.slane %v761, 2
      %v840 = vrot.slane %v761, 4
      %v841 = vrot.slane %v761, 6
      %v842 = vrot.slane %v762, 2
      %v843 = vrot.slane %v762, 4
      %v844 = vrot.slane %v762, 6
      %v845 = vrot.slane %v763, 2
      %v846 = vrot.slane %v763, 4
      %v847 = vrot.slane %v763, 6
      %v848 = vrot.slane %v764, 2
      %v849 = vrot.slane %v764, 4
      %v850 = vrot.slane %v764, 6
      %v851 = vrot.slane %v765, 2
      %v852 = vrot.slane %v765, 4
      %v853 = vrot.slane %v765, 6
      %v854 = vrot.slane %v766, 2
      %v855 = vrot.slane %v766, 4
      %v856 = vrot.slane %v766, 6
      %v857 = vrot.slane %v767, 2
      %858 = vst [vmem:[#allocation1] ss:$4 sm:$0xff] %v745
      %s859 = scalar_lea.vmem [#allocation1], 1
      %860 = vst [vmem:[%s859] ss:$4 sm:$0xff] %v791
      %s861 = scalar_lea.vmem [#allocation1], 2
      %862 = vst [vmem:[%s861] ss:$4 sm:$0xff] %v792
      %s863 = scalar_lea.vmem [#allocation1], 3
      %864 = vst [vmem:[%s863] ss:$4 sm:$0xff] %v793
      %s865 = scalar_lea.vmem [#allocation1], 32
      %866 = vst [vmem:[%s865] ss:$4 sm:$0xff] %v746
      %s867 = scalar_lea.vmem [#allocation1], 33
      %868 = vst [vmem:[%s867] ss:$4 sm:$0xff] %v794
      %s869 = scalar_lea.vmem [#allocation1], 34
      %870 = vst [vmem:[%s869] ss:$4 sm:$0xff] %v795
      %s871 = scalar_lea.vmem [#allocation1], 35
      %872 = vst [vmem:[%s871] ss:$4 sm:$0xff] %v796
      %v873 = vld.sshfl [vmem:[#allocation1] sm:$0xff pattern:$0x73625140]
      %v874 = vld.sshfl [vmem:[#allocation1 + $0x20] sm:$0xff pattern:$0x73625140]
      %875 = vst [vmem:[#allocation1] ss:$4 sm:$0xff] %v747
      %v876 = vld.sshfl [vmem:[#allocation1] sm:$0xff pattern:$0x73625140]
      %877 = vst [vmem:[%s865] ss:$4 sm:$0xff] %v797
      %878 = vst [vmem:[%s867] ss:$4 sm:$0xff] %v798
      %879 = vst [vmem:[%s869] ss:$4 sm:$0xff] %v799
      %880 = vst [vmem:[%s871] ss:$4 sm:$0xff] %v748
      %v881 = vld.sshfl [vmem:[#allocation1 + $0x20] sm:$0xff pattern:$0x73625140]
      %882 = vst [vmem:[#allocation1] ss:$4 sm:$0xff] %v800
      %883 = vst [vmem:[%s859] ss:$4 sm:$0xff] %v801
      %884 = vst [vmem:[%s861] ss:$4 sm:$0xff] %v802
      %885 = vst [vmem:[%s863] ss:$4 sm:$0xff] %v749
      %886 = vst [vmem:[%s865] ss:$4 sm:$0xff] %v803
      %v887 = vld.sshfl [vmem:[#allocation1] sm:$0xff pattern:$0x73625140]
      %v888 = vld.sshfl [vmem:[#allocation1 + $0x20] sm:$0xff pattern:$0x73625140]
      %889 = vst [vmem:[#allocation1] ss:$4 sm:$0xff] %v804
      %890 = vst [vmem:[%s859] ss:$4 sm:$0xff] %v805
      %891 = vst [vmem:[%s861] ss:$4 sm:$0xff] %v750
      %892 = vst [vmem:[%s863] ss:$4 sm:$0xff] %v806
      %893 = vst [vmem:[%s865] ss:$4 sm:$0xff] %v807
      %894 = vst [vmem:[%s867] ss:$4 sm:$0xff] %v808
      %895 = vst [vmem:[%s869] ss:$4 sm:$0xff] %v751
      %896 = vst [vmem:[%s871] ss:$4 sm:$0xff] %v809
      %v897 = vld.sshfl [vmem:[#allocation1] sm:$0xff pattern:$0x73625140]
      %v898 = vld.sshfl [vmem:[#allocation1 + $0x20] sm:$0xff pattern:$0x73625140]
      %899 = vst [vmem:[#allocation1] ss:$4 sm:$0xff] %v810
      %v900 = vld.sshfl [vmem:[#allocation1] sm:$0xff pattern:$0x73625140]
      %901 = vst [vmem:[%s865] ss:$4 sm:$0xff] %v811
      %902 = vst [vmem:[%s867] ss:$4 sm:$0xff] %v752
      %903 = vst [vmem:[%s869] ss:$4 sm:$0xff] %v812
      %904 = vst [vmem:[%s871] ss:$4 sm:$0xff] %v813
      %v905 = vld.sshfl [vmem:[#allocation1 + $0x20] sm:$0xff pattern:$0x73625140]
      %906 = vst [vmem:[#allocation1] ss:$4 sm:$0xff] %v814
      %907 = vst [vmem:[%s859] ss:$4 sm:$0xff] %v753
      %908 = vst [vmem:[%s861] ss:$4 sm:$0xff] %v815
      %909 = vst [vmem:[%s863] ss:$4 sm:$0xff] %v816
      %910 = vst [vmem:[%s865] ss:$4 sm:$0xff] %v817
      %v911 = vld.sshfl [vmem:[#allocation1] sm:$0xff pattern:$0x73625140]
      %v912 = vld.sshfl [vmem:[#allocation1 + $0x20] sm:$0xff pattern:$0x73625140]
      %913 = vst [vmem:[#allocation1] ss:$4 sm:$0xff] %v754
      %914 = vst [vmem:[%s859] ss:$4 sm:$0xff] %v818
      %915 = vst [vmem:[%s861] ss:$4 sm:$0xff] %v819
      %916 = vst [vmem:[%s863] ss:$4 sm:$0xff] %v820
      %917 = vst [vmem:[%s865] ss:$4 sm:$0xff] %v755
      %918 = vst [vmem:[%s867] ss:$4 sm:$0xff] %v821
      %919 = vst [vmem:[%s869] ss:$4 sm:$0xff] %v822
      %920 = vst [vmem:[%s871] ss:$4 sm:$0xff] %v823
      %v921 = vld.sshfl [vmem:[#allocation1] sm:$0xff pattern:$0x73625140]
      %v922 = vld.sshfl [vmem:[#allocation1 + $0x20] sm:$0xff pattern:$0x73625140]
      %923 = vst [vmem:[#allocation1] ss:$4 sm:$0xff] %v756
      %v924 = vld.sshfl [vmem:[#allocation1] sm:$0xff pattern:$0x73625140]
      %925 = vst [vmem:[%s865] ss:$4 sm:$0xff] %v824
      %926 = vst [vmem:[%s867] ss:$4 sm:$0xff] %v825
      %927 = vst [vmem:[%s869] ss:$4 sm:$0xff] %v826
      %928 = vst [vmem:[%s871] ss:$4 sm:$0xff] %v757
      %v929 = vld.sshfl [vmem:[#allocation1 + $0x20] sm:$0xff pattern:$0x73625140]
      %930 = vst [vmem:[#allocation1] ss:$4 sm:$0xff] %v827
      %931 = vst [vmem:[%s859] ss:$4 sm:$0xff] %v828
      %932 = vst [vmem:[%s861] ss:$4 sm:$0xff] %v829
      %933 = vst [vmem:[%s863] ss:$4 sm:$0xff] %v758
      %934 = vst [vmem:[%s865] ss:$4 sm:$0xff] %v830
      %v935 = vld.sshfl [vmem:[#allocation1] sm:$0xff pattern:$0x73625140]
      %v936 = vld.sshfl [vmem:[#allocation1 + $0x20] sm:$0xff pattern:$0x73625140]
      %937 = vst [vmem:[#allocation1] ss:$4 sm:$0xff] %v831
      %938 = vst [vmem:[%s859] ss:$4 sm:$0xff] %v832
      %939 = vst [vmem:[%s861] ss:$4 sm:$0xff] %v759
      %940 = vst [vmem:[%s863] ss:$4 sm:$0xff] %v833
      %941 = vst [vmem:[%s865] ss:$4 sm:$0xff] %v834
      %942 = vst [vmem:[%s867] ss:$4 sm:$0xff] %v835
      %943 = vst [vmem:[%s869] ss:$4 sm:$0xff] %v760
      %944 = vst [vmem:[%s871] ss:$4 sm:$0xff] %v836
      %v945 = vld.sshfl [vmem:[#allocation1] sm:$0xff pattern:$0x73625140]
      %v946 = vld.sshfl [vmem:[#allocation1 + $0x20] sm:$0xff pattern:$0x73625140]
      %947 = vst [vmem:[#allocation1] ss:$4 sm:$0xff] %v837
      %v948 = vld.sshfl [vmem:[#allocation1] sm:$0xff pattern:$0x73625140]
      %949 = vst [vmem:[%s865] ss:$4 sm:$0xff] %v838
      %950 = vst [vmem:[%s867] ss:$4 sm:$0xff] %v761
      %951 = vst [vmem:[%s869] ss:$4 sm:$0xff] %v839
      %952 = vst [vmem:[%s871] ss:$4 sm:$0xff] %v840
      %v953 = vld.sshfl [vmem:[#allocation1 + $0x20] sm:$0xff pattern:$0x73625140]
      %954 = vst [vmem:[#allocation1] ss:$4 sm:$0xff] %v841
      %955 = vst [vmem:[%s859] ss:$4 sm:$0xff] %v762
      %956 = vst [vmem:[%s861] ss:$4 sm:$0xff] %v842
      %957 = vst [vmem:[%s863] ss:$4 sm:$0xff] %v843
      %958 = vst [vmem:[%s865] ss:$4 sm:$0xff] %v844
      %v959 = vld.sshfl [vmem:[#allocation1] sm:$0xff pattern:$0x73625140]
      %v960 = vld.sshfl [vmem:[#allocation1 + $0x20] sm:$0xff pattern:$0x73625140]
      %961 = vst [vmem:[#allocation1] ss:$4 sm:$0xff] %v763
      %962 = vst [vmem:[%s859] ss:$4 sm:$0xff] %v845
      %963 = vst [vmem:[%s861] ss:$4 sm:$0xff] %v846
      %964 = vst [vmem:[%s863] ss:$4 sm:$0xff] %v847
      %965 = vst [vmem:[%s865] ss:$4 sm:$0xff] %v764
      %966 = vst [vmem:[%s867] ss:$4 sm:$0xff] %v848
      %967 = vst [vmem:[%s869] ss:$4 sm:$0xff] %v849
      %968 = vst [vmem:[%s871] ss:$4 sm:$0xff] %v850
      %v969 = vld.sshfl [vmem:[#allocation1] sm:$0xff pattern:$0x73625140]
      %v970 = vld.sshfl [vmem:[#allocation1 + $0x20] sm:$0xff pattern:$0x73625140]
      %971 = vst [vmem:[#allocation1] ss:$4 sm:$0xff] %v765
      %v972 = vld.sshfl [vmem:[#allocation1] sm:$0xff pattern:$0x73625140]
      %973 = vst [vmem:[%s865] ss:$4 sm:$0xff] %v851
      %974 = vst [vmem:[%s867] ss:$4 sm:$0xff] %v852
      %975 = vst [vmem:[%s869] ss:$4 sm:$0xff] %v853
      %976 = vst [vmem:[%s871] ss:$4 sm:$0xff] %v766
      %v977 = vld.sshfl [vmem:[#allocation1 + $0x20] sm:$0xff pattern:$0x73625140]
      %978 = vst [vmem:[#allocation1] ss:$4 sm:$0xff] %v854
      %979 = vst [vmem:[%s859] ss:$4 sm:$0xff] %v855
      %980 = vst [vmem:[%s861] ss:$4 sm:$0xff] %v856
      %981 = vst [vmem:[%s863] ss:$4 sm:$0xff] %v767
      %982 = vst [vmem:[%s865] ss:$4 sm:$0xff] %v857
      %v983 = vld.sshfl [vmem:[#allocation1] sm:$0xff pattern:$0x73625140]
      %v984 = vld.sshfl [vmem:[#allocation1 + $0x20] sm:$0xff pattern:$0x73625140]
      %1015 = vst [vmem:[#allocation2] sm:$0xff] %v873
      %1016 = vst [vmem:[#allocation2 + $0x8] sm:$0xff] %v874
      %1017 = vst [vmem:[#allocation2 + $0x10] sm:$0x3] %v876
      %1018 = vst [vmem:[#allocation2 + $0x18] sm:$0xff] %v881
      %1019 = vst [vmem:[#allocation2 + $0x20] sm:$0xff] %v887
      %1020 = vst [vmem:[#allocation2 + $0x28] sm:$0x3] %v888
      %1021 = vst [vmem:[#allocation2 + $0x30] sm:$0xff] %v897
      %1022 = vst [vmem:[#allocation2 + $0x38] sm:$0xff] %v898
      %1023 = vst [vmem:[#allocation2 + $0x40] sm:$0x3] %v900
      %1024 = vst [vmem:[#allocation2 + $0x48] sm:$0xff] %v905
      %1025 = vst [vmem:[#allocation2 + $0x50] sm:$0xff] %v911
      %1026 = vst [vmem:[#allocation2 + $0x58] sm:$0x3] %v912
      %1027 = vst [vmem:[#allocation2 + $0x60] sm:$0xff] %v921
      %1028 = vst [vmem:[#allocation2 + $0x68] sm:$0xff] %v922
      %1029 = vst [vmem:[#allocation2 + $0x70] sm:$0x3] %v924
      %1030 = vst [vmem:[#allocation2 + $0x78] sm:$0xff] %v929
      %1031 = vst [vmem:[#allocation2 + $0x80] sm:$0xff] %v935
      %1032 = vst [vmem:[#allocation2 + $0x88] sm:$0x3] %v936
      %1033 = vst [vmem:[#allocation2 + $0x90] sm:$0xff] %v945
      %1034 = vst [vmem:[#allocation2 + $0x98] sm:$0xff] %v946
      %1035 = vst [vmem:[#allocation2 + $0xa0] sm:$0x3] %v948
      %1036 = vst [vmem:[#allocation2 + $0xa8] sm:$0xff] %v953
      %1037 = vst [vmem:[#allocation2 + $0xb0] sm:$0xff] %v959
      %1038 = vst [vmem:[#allocation2 + $0xb8] sm:$0x3] %v960
      %1039 = vst [vmem:[#allocation2 + $0xc0] sm:$0xff] %v969
      %1040 = vst [vmem:[#allocation2 + $0xc8] sm:$0xff] %v970
      %1041 = vst [vmem:[#allocation2 + $0xd0] sm:$0x3] %v972
      %1042 = vst [vmem:[#allocation2 + $0xd8] sm:$0xff] %v977
      %1043 = vst [vmem:[#allocation2 + $0xe0] sm:$0xff] %v983
      %1044 = vst [vmem:[#allocation2 + $0xe8] sm:$0x3] %v984
      %1045 = vst [vmem:[#allocation2] sm:$0x1] 0.0
      %1046 = vst [vmem:[#allocation2 + $0x18] sm:$0x1] 0.0
      %1047 = vst [vmem:[#allocation2 + $0x30] sm:$0x1] 0.0
      %1048 = vst [vmem:[#allocation2 + $0x48] sm:$0x1] 0.0
      %1049 = vst [vmem:[#allocation2 + $0x60] sm:$0x1] 0.0
      %1050 = vst [vmem:[#allocation2 + $0x78] sm:$0x1] 0.0
      %1051 = vst [vmem:[#allocation2 + $0x90] sm:$0x1] 0.0
      %1052 = vst [vmem:[#allocation2 + $0xa8] sm:$0x1] 0.0
      %1053 = vst [vmem:[#allocation2 + $0xc0] sm:$0x1] 0.0
      %1054 = vst [vmem:[#allocation2 + $0xd8] sm:$0x1] 0.0
      %1055 = vst [vmem:[#allocation2 + $0x11] sm:$0x1] 0.0
      %1056 = vst [vmem:[#allocation2 + $0x29] sm:$0x1] 0.0
      %1057 = vst [vmem:[#allocation2 + $0x41] sm:$0x1] 0.0
      %1058 = vst [vmem:[#allocation2 + $0x59] sm:$0x1] 0.0
      %1059 = vst [vmem:[#allocation2 + $0x71] sm:$0x1] 0.0
      %1060 = vst [vmem:[#allocation2 + $0x89] sm:$0x1] 0.0
      %1061 = vst [vmem:[#allocation2 + $0xa1] sm:$0x1] 0.0
      %1062 = vst [vmem:[#allocation2 + $0xb9] sm:$0x1] 0.0
      %1063 = vst [vmem:[#allocation2 + $0xd1] sm:$0x1] 0.0
      %1064 = vst [vmem:[#allocation2 + $0xe9] sm:$0x1] 0.0
      %p1065 = scmp.eq.s32.totalorder %s330, 0
      // Predicated region
      $region53: #{tpu_custom_call.1} parent=51 // pred_check
        %p1066 = pneg %p1065
      $region54: #{tpu_custom_call.1} parent=51 // pred_check_branch
        %1068 = sbr.rel (%p1066) target = $region56
      $region55: #{tpu_custom_call.1} parent=51 // pred_region
        %1069 = vst [vmem:[#allocation2] sm:$0xff] 0.0
        %1070 = vst [vmem:[#allocation2 + $0x8] sm:$0xff] 0.0
        %1071 = vst [vmem:[#allocation2 + $0x10] sm:$0x3] 0.0
      $region56: #{tpu_custom_call.1} parent=51 // pred_fallthru
        _
      %s1072 = sadd.s32 %s330, 10
      %p1073 = scmp.eq.s32.totalorder %s1072, 18
      // Predicated region
      $region57: #{tpu_custom_call.1} parent=51 // pred_check
        %p1074 = pneg %p1073
      $region58: #{tpu_custom_call.1} parent=51 // pred_check_branch
        %1076 = sbr.rel (%p1074) target = $region60
      $region59: #{tpu_custom_call.1} parent=51 // pred_region
        %s1077 = scalar_lea.vmem [#allocation2], 216
        %1078 = vst [vmem:[%s1077] sm:$0xff] 0.0
        %1079 = vst [vmem:[%s1077 + $0x8] sm:$0xff] 0.0
        %1080 = vst [vmem:[%s1077 + $0x10] sm:$0x3] 0.0
      $region60: #{tpu_custom_call.1} parent=51 // pred_fallthru
        _
      %v1081 = vld [vmem:[#allocation2] sm:$0xff]
      %v1082 = vld [vmem:[#allocation2 + $0x8] sm:$0xff]
      %v1083 = vld [vmem:[#allocation2 + $0x18] sm:$0xff]
      %v1084 = vld [vmem:[#allocation2 + $0x20] sm:$0xff]
      %v1085 = vld [vmem:[#allocation2 + $0x30] sm:$0xff]
      %v1086 = vld [vmem:[#allocation2 + $0x38] sm:$0xff]
      %v1087 = vld [vmem:[#allocation2 + $0x48] sm:$0xff]
      %v1088 = vld [vmem:[#allocation2 + $0x50] sm:$0xff]
      %v1089 = vld [vmem:[#allocation2 + $0x60] sm:$0xff]
      %v1090 = vld [vmem:[#allocation2 + $0x68] sm:$0xff]
      %v1091 = vld [vmem:[#allocation2 + $0x78] sm:$0xff]
      %v1092 = vld [vmem:[#allocation2 + $0x80] sm:$0xff]
      %v1093 = vld [vmem:[#allocation2 + $0x90] sm:$0xff]
      %v1094 = vld [vmem:[#allocation2 + $0x98] sm:$0xff]
      %v1095 = vld [vmem:[#allocation2 + $0xa8] sm:$0xff]
      %v1096 = vld [vmem:[#allocation2 + $0xb0] sm:$0xff]
      %v1097 = vld [vmem:[%s3] sm:$0x1]
      %v1098 = vperm.slane %v1097, 0
      %v1099 = vmul.f32 %v1081, %v1098
      %v1100 = vmul.f32 %v1082, %v1098
      %v1101 = vmul.f32 %v1083, %v1098
      %v1102 = vmul.f32 %v1084, %v1098
      %v1103 = vmul.f32 %v1085, %v1098
      %v1104 = vmul.f32 %v1086, %v1098
      %v1105 = vmul.f32 %v1087, %v1098
      %v1106 = vmul.f32 %v1088, %v1098
      %v1107 = vmul.f32 %v1089, %v1098
      %v1108 = vmul.f32 %v1090, %v1098
      %v1109 = vmul.f32 %v1091, %v1098
      %v1110 = vmul.f32 %v1092, %v1098
      %v1111 = vmul.f32 %v1093, %v1098
      %v1112 = vmul.f32 %v1094, %v1098
      %v1113 = vmul.f32 %v1095, %v1098
      %v1114 = vmul.f32 %v1096, %v1098
      %v1115 = vadd.f32 %v1099, 0.0
      %v1116 = vadd.f32 %v1100, 0.0
      %v1117 = vadd.f32 %v1101, 0.0
      %v1118 = vadd.f32 %v1102, 0.0
      %v1119 = vadd.f32 %v1103, 0.0
      %v1120 = vadd.f32 %v1104, 0.0
      %v1121 = vadd.f32 %v1105, 0.0
      %v1122 = vadd.f32 %v1106, 0.0
      %v1123 = vadd.f32 %v1107, 0.0
      %v1124 = vadd.f32 %v1108, 0.0
      %v1125 = vadd.f32 %v1109, 0.0
      %v1126 = vadd.f32 %v1110, 0.0
      %v1127 = vadd.f32 %v1111, 0.0
      %v1128 = vadd.f32 %v1112, 0.0
      %v1129 = vadd.f32 %v1113, 0.0
      %v1130 = vadd.f32 %v1114, 0.0
      %v1131 = vld [vmem:[#allocation2 + $0x1] sm:$0xff]
      %v1132 = vld [vmem:[#allocation2 + $0x9] sm:$0xff]
      %v1133 = vld [vmem:[#allocation2 + $0x19] sm:$0xff]
      %v1134 = vld [vmem:[#allocation2 + $0x21] sm:$0xff]
      %v1135 = vld [vmem:[#allocation2 + $0x31] sm:$0xff]
      %v1136 = vld [vmem:[#allocation2 + $0x39] sm:$0xff]
      %v1137 = vld [vmem:[#allocation2 + $0x49] sm:$0xff]
      %v1138 = vld [vmem:[#allocation2 + $0x51] sm:$0xff]
      %v1139 = vld [vmem:[#allocation2 + $0x61] sm:$0xff]
      %v1140 = vld [vmem:[#allocation2 + $0x69] sm:$0xff]
      %v1141 = vld [vmem:[#allocation2 + $0x79] sm:$0xff]
      %v1142 = vld [vmem:[#allocation2 + $0x81] sm:$0xff]
      %v1143 = vld [vmem:[#allocation2 + $0x91] sm:$0xff]
      %v1144 = vld [vmem:[#allocation2 + $0x99] sm:$0xff]
      %v1145 = vld [vmem:[#allocation2 + $0xa9] sm:$0xff]
      %v1146 = vld [vmem:[#allocation2 + $0xb1] sm:$0xff]
      %v1147 = vld [vmem:[%s3 + $0x1] sm:$0x1]
      %v1148 = vperm.slane %v1147, 0
      %v1149 = vmul.f32 %v1131, %v1148
      %v1150 = vmul.f32 %v1132, %v1148
      %v1151 = vmul.f32 %v1133, %v1148
      %v1152 = vmul.f32 %v1134, %v1148
      %v1153 = vmul.f32 %v1135, %v1148
      %v1154 = vmul.f32 %v1136, %v1148
      %v1155 = vmul.f32 %v1137, %v1148
      %v1156 = vmul.f32 %v1138, %v1148
      %v1157 = vmul.f32 %v1139, %v1148
      %v1158 = vmul.f32 %v1140, %v1148
      %v1159 = vmul.f32 %v1141, %v1148
      %v1160 = vmul.f32 %v1142, %v1148
      %v1161 = vmul.f32 %v1143, %v1148
      %v1162 = vmul.f32 %v1144, %v1148
      %v1163 = vmul.f32 %v1145, %v1148
      %v1164 = vmul.f32 %v1146, %v1148
      %v1165 = vadd.f32 %v1115, %v1149
      %v1166 = vadd.f32 %v1116, %v1150
      %v1167 = vadd.f32 %v1117, %v1151
      %v1168 = vadd.f32 %v1118, %v1152
      %v1169 = vadd.f32 %v1119, %v1153
      %v1170 = vadd.f32 %v1120, %v1154
      %v1171 = vadd.f32 %v1121, %v1155
      %v1172 = vadd.f32 %v1122, %v1156
      %v1173 = vadd.f32 %v1123, %v1157
      %v1174 = vadd.f32 %v1124, %v1158
      %v1175 = vadd.f32 %v1125, %v1159
      %v1176 = vadd.f32 %v1126, %v1160
      %v1177 = vadd.f32 %v1127, %v1161
      %v1178 = vadd.f32 %v1128, %v1162
      %v1179 = vadd.f32 %v1129, %v1163
      %v1180 = vadd.f32 %v1130, %v1164
      %v1181 = vld [vmem:[#allocation2 + $0x2] sm:$0xff]
      %v1182 = vld [vmem:[#allocation2 + $0xa] sm:$0xff]
      %v1183 = vld [vmem:[#allocation2 + $0x1a] sm:$0xff]
      %v1184 = vld [vmem:[#allocation2 + $0x22] sm:$0xff]
      %v1185 = vld [vmem:[#allocation2 + $0x32] sm:$0xff]
      %v1186 = vld [vmem:[#allocation2 + $0x3a] sm:$0xff]
      %v1187 = vld [vmem:[#allocation2 + $0x4a] sm:$0xff]
      %v1188 = vld [vmem:[#allocation2 + $0x52] sm:$0xff]
      %v1189 = vld [vmem:[#allocation2 + $0x62] sm:$0xff]
      %v1190 = vld [vmem:[#allocation2 + $0x6a] sm:$0xff]
      %v1191 = vld [vmem:[#allocation2 + $0x7a] sm:$0xff]
      %v1192 = vld [vmem:[#allocation2 + $0x82] sm:$0xff]
      %v1193 = vld [vmem:[#allocation2 + $0x92] sm:$0xff]
      %v1194 = vld [vmem:[#allocation2 + $0x9a] sm:$0xff]
      %v1195 = vld [vmem:[#allocation2 + $0xaa] sm:$0xff]
      %v1196 = vld [vmem:[#allocation2 + $0xb2] sm:$0xff]
      %v1197 = vld [vmem:[%s3 + $0x2] sm:$0x1]
      %v1198 = vperm.slane %v1197, 0
      %v1199 = vmul.f32 %v1181, %v1198
      %v1200 = vmul.f32 %v1182, %v1198
      %v1201 = vmul.f32 %v1183, %v1198
      %v1202 = vmul.f32 %v1184, %v1198
      %v1203 = vmul.f32 %v1185, %v1198
      %v1204 = vmul.f32 %v1186, %v1198
      %v1205 = vmul.f32 %v1187, %v1198
      %v1206 = vmul.f32 %v1188, %v1198
      %v1207 = vmul.f32 %v1189, %v1198
      %v1208 = vmul.f32 %v1190, %v1198
      %v1209 = vmul.f32 %v1191, %v1198
      %v1210 = vmul.f32 %v1192, %v1198
      %v1211 = vmul.f32 %v1193, %v1198
      %v1212 = vmul.f32 %v1194, %v1198
      %v1213 = vmul.f32 %v1195, %v1198
      %v1214 = vmul.f32 %v1196, %v1198
      %v1215 = vadd.f32 %v1165, %v1199
      %v1216 = vadd.f32 %v1166, %v1200
      %v1217 = vadd.f32 %v1167, %v1201
      %v1218 = vadd.f32 %v1168, %v1202
      %v1219 = vadd.f32 %v1169, %v1203
      %v1220 = vadd.f32 %v1170, %v1204
      %v1221 = vadd.f32 %v1171, %v1205
      %v1222 = vadd.f32 %v1172, %v1206
      %v1223 = vadd.f32 %v1173, %v1207
      %v1224 = vadd.f32 %v1174, %v1208
      %v1225 = vadd.f32 %v1175, %v1209
      %v1226 = vadd.f32 %v1176, %v1210
      %v1227 = vadd.f32 %v1177, %v1211
      %v1228 = vadd.f32 %v1178, %v1212
      %v1229 = vadd.f32 %v1179, %v1213
      %v1230 = vadd.f32 %v1180, %v1214
      %s1231 = scalar_lea.vmem [#allocation2], 24
      %v1232 = vld [vmem:[%s1231] sm:$0xff]
      %v1233 = vld [vmem:[%s1231 + $0x8] sm:$0xff]
      %v1234 = vld [vmem:[%s1231 + $0x18] sm:$0xff]
      %v1235 = vld [vmem:[%s1231 + $0x20] sm:$0xff]
      %v1236 = vld [vmem:[%s1231 + $0x30] sm:$0xff]
      %v1237 = vld [vmem:[%s1231 + $0x38] sm:$0xff]
      %v1238 = vld [vmem:[%s1231 + $0x48] sm:$0xff]
      %v1239 = vld [vmem:[%s1231 + $0x50] sm:$0xff]
      %v1240 = vld [vmem:[%s1231 + $0x60] sm:$0xff]
      %v1241 = vld [vmem:[%s1231 + $0x68] sm:$0xff]
      %v1242 = vld [vmem:[%s1231 + $0x78] sm:$0xff]
      %v1243 = vld [vmem:[%s1231 + $0x80] sm:$0xff]
      %v1244 = vld [vmem:[%s1231 + $0x90] sm:$0xff]
      %v1245 = vld [vmem:[%s1231 + $0x98] sm:$0xff]
      %v1246 = vld [vmem:[%s1231 + $0xa8] sm:$0xff]
      %v1247 = vld [vmem:[%s1231 + $0xb0] sm:$0xff]
      %v1248 = vld [vmem:[%s3 + $0x3] sm:$0x1]
      %v1249 = vperm.slane %v1248, 0
      %v1250 = vmul.f32 %v1232, %v1249
      %v1251 = vmul.f32 %v1233, %v1249
      %v1252 = vmul.f32 %v1234, %v1249
      %v1253 = vmul.f32 %v1235, %v1249
      %v1254 = vmul.f32 %v1236, %v1249
      %v1255 = vmul.f32 %v1237, %v1249
      %v1256 = vmul.f32 %v1238, %v1249
      %v1257 = vmul.f32 %v1239, %v1249
      %v1258 = vmul.f32 %v1240, %v1249
      %v1259 = vmul.f32 %v1241, %v1249
      %v1260 = vmul.f32 %v1242, %v1249
      %v1261 = vmul.f32 %v1243, %v1249
      %v1262 = vmul.f32 %v1244, %v1249
      %v1263 = vmul.f32 %v1245, %v1249
      %v1264 = vmul.f32 %v1246, %v1249
      %v1265 = vmul.f32 %v1247, %v1249
      %v1266 = vadd.f32 %v1215, %v1250
      %v1267 = vadd.f32 %v1216, %v1251
      %v1268 = vadd.f32 %v1217, %v1252
      %v1269 = vadd.f32 %v1218, %v1253
      %v1270 = vadd.f32 %v1219, %v1254
      %v1271 = vadd.f32 %v1220, %v1255
      %v1272 = vadd.f32 %v1221, %v1256
      %v1273 = vadd.f32 %v1222, %v1257
      %v1274 = vadd.f32 %v1223, %v1258
      %v1275 = vadd.f32 %v1224, %v1259
      %v1276 = vadd.f32 %v1225, %v1260
      %v1277 = vadd.f32 %v1226, %v1261
      %v1278 = vadd.f32 %v1227, %v1262
      %v1279 = vadd.f32 %v1228, %v1263
      %v1280 = vadd.f32 %v1229, %v1264
      %v1281 = vadd.f32 %v1230, %v1265
      %v1282 = vld [vmem:[%s1231 + $0x1] sm:$0xff]
      %v1283 = vld [vmem:[%s1231 + $0x9] sm:$0xff]
      %v1284 = vld [vmem:[%s1231 + $0x19] sm:$0xff]
      %v1285 = vld [vmem:[%s1231 + $0x21] sm:$0xff]
      %v1286 = vld [vmem:[%s1231 + $0x31] sm:$0xff]
      %v1287 = vld [vmem:[%s1231 + $0x39] sm:$0xff]
      %v1288 = vld [vmem:[%s1231 + $0x49] sm:$0xff]
      %v1289 = vld [vmem:[%s1231 + $0x51] sm:$0xff]
      %v1290 = vld [vmem:[%s1231 + $0x61] sm:$0xff]
      %v1291 = vld [vmem:[%s1231 + $0x69] sm:$0xff]
      %v1292 = vld [vmem:[%s1231 + $0x79] sm:$0xff]
      %v1293 = vld [vmem:[%s1231 + $0x81] sm:$0xff]
      %v1294 = vld [vmem:[%s1231 + $0x91] sm:$0xff]
      %v1295 = vld [vmem:[%s1231 + $0x99] sm:$0xff]
      %v1296 = vld [vmem:[%s1231 + $0xa9] sm:$0xff]
      %v1297 = vld [vmem:[%s1231 + $0xb1] sm:$0xff]
      %v1298 = vld [vmem:[%s3 + $0x4] sm:$0x1]
      %v1299 = vperm.slane %v1298, 0
      %v1300 = vmul.f32 %v1282, %v1299
      %v1301 = vmul.f32 %v1283, %v1299
      %v1302 = vmul.f32 %v1284, %v1299
      %v1303 = vmul.f32 %v1285, %v1299
      %v1304 = vmul.f32 %v1286, %v1299
      %v1305 = vmul.f32 %v1287, %v1299
      %v1306 = vmul.f32 %v1288, %v1299
      %v1307 = vmul.f32 %v1289, %v1299
      %v1308 = vmul.f32 %v1290, %v1299
      %v1309 = vmul.f32 %v1291, %v1299
      %v1310 = vmul.f32 %v1292, %v1299
      %v1311 = vmul.f32 %v1293, %v1299
      %v1312 = vmul.f32 %v1294, %v1299
      %v1313 = vmul.f32 %v1295, %v1299
      %v1314 = vmul.f32 %v1296, %v1299
      %v1315 = vmul.f32 %v1297, %v1299
      %v1316 = vadd.f32 %v1266, %v1300
      %v1317 = vadd.f32 %v1267, %v1301
      %v1318 = vadd.f32 %v1268, %v1302
      %v1319 = vadd.f32 %v1269, %v1303
      %v1320 = vadd.f32 %v1270, %v1304
      %v1321 = vadd.f32 %v1271, %v1305
      %v1322 = vadd.f32 %v1272, %v1306
      %v1323 = vadd.f32 %v1273, %v1307
      %v1324 = vadd.f32 %v1274, %v1308
      %v1325 = vadd.f32 %v1275, %v1309
      %v1326 = vadd.f32 %v1276, %v1310
      %v1327 = vadd.f32 %v1277, %v1311
      %v1328 = vadd.f32 %v1278, %v1312
      %v1329 = vadd.f32 %v1279, %v1313
      %v1330 = vadd.f32 %v1280, %v1314
      %v1331 = vadd.f32 %v1281, %v1315
      %v1332 = vld [vmem:[%s1231 + $0x2] sm:$0xff]
      %v1333 = vld [vmem:[%s1231 + $0xa] sm:$0xff]
      %v1334 = vld [vmem:[%s1231 + $0x1a] sm:$0xff]
      %v1335 = vld [vmem:[%s1231 + $0x22] sm:$0xff]
      %v1336 = vld [vmem:[%s1231 + $0x32] sm:$0xff]
      %v1337 = vld [vmem:[%s1231 + $0x3a] sm:$0xff]
      %v1338 = vld [vmem:[%s1231 + $0x4a] sm:$0xff]
      %v1339 = vld [vmem:[%s1231 + $0x52] sm:$0xff]
      %v1340 = vld [vmem:[%s1231 + $0x62] sm:$0xff]
      %v1341 = vld [vmem:[%s1231 + $0x6a] sm:$0xff]
      %v1342 = vld [vmem:[%s1231 + $0x7a] sm:$0xff]
      %v1343 = vld [vmem:[%s1231 + $0x82] sm:$0xff]
      %v1344 = vld [vmem:[%s1231 + $0x92] sm:$0xff]
      %v1345 = vld [vmem:[%s1231 + $0x9a] sm:$0xff]
      %v1346 = vld [vmem:[%s1231 + $0xaa] sm:$0xff]
      %v1347 = vld [vmem:[%s1231 + $0xb2] sm:$0xff]
      %v1348 = vld [vmem:[%s3 + $0x5] sm:$0x1]
      %v1349 = vperm.slane %v1348, 0
      %v1350 = vmul.f32 %v1332, %v1349
      %v1351 = vmul.f32 %v1333, %v1349
      %v1352 = vmul.f32 %v1334, %v1349
      %v1353 = vmul.f32 %v1335, %v1349
      %v1354 = vmul.f32 %v1336, %v1349
      %v1355 = vmul.f32 %v1337, %v1349
      %v1356 = vmul.f32 %v1338, %v1349
      %v1357 = vmul.f32 %v1339, %v1349
      %v1358 = vmul.f32 %v1340, %v1349
      %v1359 = vmul.f32 %v1341, %v1349
      %v1360 = vmul.f32 %v1342, %v1349
      %v1361 = vmul.f32 %v1343, %v1349
      %v1362 = vmul.f32 %v1344, %v1349
      %v1363 = vmul.f32 %v1345, %v1349
      %v1364 = vmul.f32 %v1346, %v1349
      %v1365 = vmul.f32 %v1347, %v1349
      %v1366 = vadd.f32 %v1316, %v1350
      %v1367 = vadd.f32 %v1317, %v1351
      %v1368 = vadd.f32 %v1318, %v1352
      %v1369 = vadd.f32 %v1319, %v1353
      %v1370 = vadd.f32 %v1320, %v1354
      %v1371 = vadd.f32 %v1321, %v1355
      %v1372 = vadd.f32 %v1322, %v1356
      %v1373 = vadd.f32 %v1323, %v1357
      %v1374 = vadd.f32 %v1324, %v1358
      %v1375 = vadd.f32 %v1325, %v1359
      %v1376 = vadd.f32 %v1326, %v1360
      %v1377 = vadd.f32 %v1327, %v1361
      %v1378 = vadd.f32 %v1328, %v1362
      %v1379 = vadd.f32 %v1329, %v1363
      %v1380 = vadd.f32 %v1330, %v1364
      %v1381 = vadd.f32 %v1331, %v1365
      %s1382 = scalar_lea.vmem [#allocation2], 48
      %v1383 = vld [vmem:[%s1382] sm:$0xff]
      %v1384 = vld [vmem:[%s1382 + $0x8] sm:$0xff]
      %v1385 = vld [vmem:[%s1382 + $0x18] sm:$0xff]
      %v1386 = vld [vmem:[%s1382 + $0x20] sm:$0xff]
      %v1387 = vld [vmem:[%s1382 + $0x30] sm:$0xff]
      %v1388 = vld [vmem:[%s1382 + $0x38] sm:$0xff]
      %v1389 = vld [vmem:[%s1382 + $0x48] sm:$0xff]
      %v1390 = vld [vmem:[%s1382 + $0x50] sm:$0xff]
      %v1391 = vld [vmem:[%s1382 + $0x60] sm:$0xff]
      %v1392 = vld [vmem:[%s1382 + $0x68] sm:$0xff]
      %v1393 = vld [vmem:[%s1382 + $0x78] sm:$0xff]
      %v1394 = vld [vmem:[%s1382 + $0x80] sm:$0xff]
      %v1395 = vld [vmem:[%s1382 + $0x90] sm:$0xff]
      %v1396 = vld [vmem:[%s1382 + $0x98] sm:$0xff]
      %v1397 = vld [vmem:[%s1382 + $0xa8] sm:$0xff]
      %v1398 = vld [vmem:[%s1382 + $0xb0] sm:$0xff]
      %v1399 = vld [vmem:[%s3 + $0x6] sm:$0x1]
      %v1400 = vperm.slane %v1399, 0
      %v1401 = vmul.f32 %v1383, %v1400
      %v1402 = vmul.f32 %v1384, %v1400
      %v1403 = vmul.f32 %v1385, %v1400
      %v1404 = vmul.f32 %v1386, %v1400
      %v1405 = vmul.f32 %v1387, %v1400
      %v1406 = vmul.f32 %v1388, %v1400
      %v1407 = vmul.f32 %v1389, %v1400
      %v1408 = vmul.f32 %v1390, %v1400
      %v1409 = vmul.f32 %v1391, %v1400
      %v1410 = vmul.f32 %v1392, %v1400
      %v1411 = vmul.f32 %v1393, %v1400
      %v1412 = vmul.f32 %v1394, %v1400
      %v1413 = vmul.f32 %v1395, %v1400
      %v1414 = vmul.f32 %v1396, %v1400
      %v1415 = vmul.f32 %v1397, %v1400
      %v1416 = vmul.f32 %v1398, %v1400
      %v1417 = vadd.f32 %v1366, %v1401
      %v1418 = vadd.f32 %v1367, %v1402
      %v1419 = vadd.f32 %v1368, %v1403
      %v1420 = vadd.f32 %v1369, %v1404
      %v1421 = vadd.f32 %v1370, %v1405
      %v1422 = vadd.f32 %v1371, %v1406
      %v1423 = vadd.f32 %v1372, %v1407
      %v1424 = vadd.f32 %v1373, %v1408
      %v1425 = vadd.f32 %v1374, %v1409
      %v1426 = vadd.f32 %v1375, %v1410
      %v1427 = vadd.f32 %v1376, %v1411
      %v1428 = vadd.f32 %v1377, %v1412
      %v1429 = vadd.f32 %v1378, %v1413
      %v1430 = vadd.f32 %v1379, %v1414
      %v1431 = vadd.f32 %v1380, %v1415
      %v1432 = vadd.f32 %v1381, %v1416
      %v1433 = vld [vmem:[%s1382 + $0x1] sm:$0xff]
      %v1434 = vld [vmem:[%s1382 + $0x9] sm:$0xff]
      %v1435 = vld [vmem:[%s1382 + $0x19] sm:$0xff]
      %v1436 = vld [vmem:[%s1382 + $0x21] sm:$0xff]
      %v1437 = vld [vmem:[%s1382 + $0x31] sm:$0xff]
      %v1438 = vld [vmem:[%s1382 + $0x39] sm:$0xff]
      %v1439 = vld [vmem:[%s1382 + $0x49] sm:$0xff]
      %v1440 = vld [vmem:[%s1382 + $0x51] sm:$0xff]
      %v1441 = vld [vmem:[%s1382 + $0x61] sm:$0xff]
      %v1442 = vld [vmem:[%s1382 + $0x69] sm:$0xff]
      %v1443 = vld [vmem:[%s1382 + $0x79] sm:$0xff]
      %v1444 = vld [vmem:[%s1382 + $0x81] sm:$0xff]
      %v1445 = vld [vmem:[%s1382 + $0x91] sm:$0xff]
      %v1446 = vld [vmem:[%s1382 + $0x99] sm:$0xff]
      %v1447 = vld [vmem:[%s1382 + $0xa9] sm:$0xff]
      %v1448 = vld [vmem:[%s1382 + $0xb1] sm:$0xff]
      %v1449 = vld [vmem:[%s3 + $0x7] sm:$0x1]
      %v1450 = vperm.slane %v1449, 0
      %v1451 = vmul.f32 %v1433, %v1450
      %v1452 = vmul.f32 %v1434, %v1450
      %v1453 = vmul.f32 %v1435, %v1450
      %v1454 = vmul.f32 %v1436, %v1450
      %v1455 = vmul.f32 %v1437, %v1450
      %v1456 = vmul.f32 %v1438, %v1450
      %v1457 = vmul.f32 %v1439, %v1450
      %v1458 = vmul.f32 %v1440, %v1450
      %v1459 = vmul.f32 %v1441, %v1450
      %v1460 = vmul.f32 %v1442, %v1450
      %v1461 = vmul.f32 %v1443, %v1450
      %v1462 = vmul.f32 %v1444, %v1450
      %v1463 = vmul.f32 %v1445, %v1450
      %v1464 = vmul.f32 %v1446, %v1450
      %v1465 = vmul.f32 %v1447, %v1450
      %v1466 = vmul.f32 %v1448, %v1450
      %v1467 = vadd.f32 %v1417, %v1451
      %v1468 = vadd.f32 %v1418, %v1452
      %v1469 = vadd.f32 %v1419, %v1453
      %v1470 = vadd.f32 %v1420, %v1454
      %v1471 = vadd.f32 %v1421, %v1455
      %v1472 = vadd.f32 %v1422, %v1456
      %v1473 = vadd.f32 %v1423, %v1457
      %v1474 = vadd.f32 %v1424, %v1458
      %v1475 = vadd.f32 %v1425, %v1459
      %v1476 = vadd.f32 %v1426, %v1460
      %v1477 = vadd.f32 %v1427, %v1461
      %v1478 = vadd.f32 %v1428, %v1462
      %v1479 = vadd.f32 %v1429, %v1463
      %v1480 = vadd.f32 %v1430, %v1464
      %v1481 = vadd.f32 %v1431, %v1465
      %v1482 = vadd.f32 %v1432, %v1466
      %v1483 = vld [vmem:[%s1382 + $0x2] sm:$0xff]
      %v1484 = vld [vmem:[%s1382 + $0xa] sm:$0xff]
      %v1485 = vld [vmem:[%s1382 + $0x1a] sm:$0xff]
      %v1486 = vld [vmem:[%s1382 + $0x22] sm:$0xff]
      %v1487 = vld [vmem:[%s1382 + $0x32] sm:$0xff]
      %v1488 = vld [vmem:[%s1382 + $0x3a] sm:$0xff]
      %v1489 = vld [vmem:[%s1382 + $0x4a] sm:$0xff]
      %v1490 = vld [vmem:[%s1382 + $0x52] sm:$0xff]
      %v1491 = vld [vmem:[%s1382 + $0x62] sm:$0xff]
      %v1492 = vld [vmem:[%s1382 + $0x6a] sm:$0xff]
      %v1493 = vld [vmem:[%s1382 + $0x7a] sm:$0xff]
      %v1494 = vld [vmem:[%s1382 + $0x82] sm:$0xff]
      %v1495 = vld [vmem:[%s1382 + $0x92] sm:$0xff]
      %v1496 = vld [vmem:[%s1382 + $0x9a] sm:$0xff]
      %v1497 = vld [vmem:[%s1382 + $0xaa] sm:$0xff]
      %v1498 = vld [vmem:[%s1382 + $0xb2] sm:$0xff]
      %v1499 = vld [vmem:[%s3 + $0x8] sm:$0x1]
      %v1500 = vperm.slane %v1499, 0
      %v1501 = vmul.f32 %v1483, %v1500
      %v1502 = vmul.f32 %v1484, %v1500
      %v1503 = vmul.f32 %v1485, %v1500
      %v1504 = vmul.f32 %v1486, %v1500
      %v1505 = vmul.f32 %v1487, %v1500
      %v1506 = vmul.f32 %v1488, %v1500
      %v1507 = vmul.f32 %v1489, %v1500
      %v1508 = vmul.f32 %v1490, %v1500
      %v1509 = vmul.f32 %v1491, %v1500
      %v1510 = vmul.f32 %v1492, %v1500
      %v1511 = vmul.f32 %v1493, %v1500
      %v1512 = vmul.f32 %v1494, %v1500
      %v1513 = vmul.f32 %v1495, %v1500
      %v1514 = vmul.f32 %v1496, %v1500
      %v1515 = vmul.f32 %v1497, %v1500
      %v1516 = vmul.f32 %v1498, %v1500
      %v1517 = vadd.f32 %v1467, %v1501
      %v1518 = vadd.f32 %v1468, %v1502
      %v1519 = vadd.f32 %v1469, %v1503
      %v1520 = vadd.f32 %v1470, %v1504
      %v1521 = vadd.f32 %v1471, %v1505
      %v1522 = vadd.f32 %v1472, %v1506
      %v1523 = vadd.f32 %v1473, %v1507
      %v1524 = vadd.f32 %v1474, %v1508
      %v1525 = vadd.f32 %v1475, %v1509
      %v1526 = vadd.f32 %v1476, %v1510
      %v1527 = vadd.f32 %v1477, %v1511
      %v1528 = vadd.f32 %v1478, %v1512
      %v1529 = vadd.f32 %v1479, %v1513
      %v1530 = vadd.f32 %v1480, %v1514
      %v1531 = vadd.f32 %v1481, %v1515
      %v1532 = vadd.f32 %v1482, %v1516
      %v1533 = vld [vmem:[%s4] sm:$0x1]
      %v1535 = vperm.slane %v1533, 0
      %v1537 = vadd.f32 %v1517, %v1535
      %v1538 = vadd.f32 %v1518, %v1535
      %v1539 = vadd.f32 %v1519, %v1535
      %v1540 = vadd.f32 %v1520, %v1535
      %v1541 = vadd.f32 %v1521, %v1535
      %v1542 = vadd.f32 %v1522, %v1535
      %v1543 = vadd.f32 %v1523, %v1535
      %v1544 = vadd.f32 %v1524, %v1535
      %v1545 = vadd.f32 %v1525, %v1535
      %v1546 = vadd.f32 %v1526, %v1535
      %v1547 = vadd.f32 %v1527, %v1535
      %v1548 = vadd.f32 %v1528, %v1535
      %v1549 = vadd.f32 %v1529, %v1535
      %v1550 = vadd.f32 %v1530, %v1535
      %v1551 = vadd.f32 %v1531, %v1535
      %v1552 = vadd.f32 %v1532, %v1535
      %v1553 = vmax.f32 %v1537, 0.0
      %v1554 = vmax.f32 %v1538, 0.0
      %v1555 = vmax.f32 %v1539, 0.0
      %v1556 = vmax.f32 %v1540, 0.0
      %v1557 = vmax.f32 %v1541, 0.0
      %v1558 = vmax.f32 %v1542, 0.0
      %v1559 = vmax.f32 %v1543, 0.0
      %v1560 = vmax.f32 %v1544, 0.0
      %v1561 = vmax.f32 %v1545, 0.0
      %v1562 = vmax.f32 %v1546, 0.0
      %v1563 = vmax.f32 %v1547, 0.0
      %v1564 = vmax.f32 %v1548, 0.0
      %v1565 = vmax.f32 %v1549, 0.0
      %v1566 = vmax.f32 %v1550, 0.0
      %v1567 = vmax.f32 %v1551, 0.0
      %v1568 = vmax.f32 %v1552, 0.0
      %v1569 = vmin.f32 %v1553, 6.0
      %v1570 = vmin.f32 %v1554, 6.0
      %v1571 = vmin.f32 %v1555, 6.0
      %v1572 = vmin.f32 %v1556, 6.0
      %v1573 = vmin.f32 %v1557, 6.0
      %v1574 = vmin.f32 %v1558, 6.0
      %v1575 = vmin.f32 %v1559, 6.0
      %v1576 = vmin.f32 %v1560, 6.0
      %v1577 = vmin.f32 %v1561, 6.0
      %v1578 = vmin.f32 %v1562, 6.0
      %v1579 = vmin.f32 %v1563, 6.0
      %v1580 = vmin.f32 %v1564, 6.0
      %v1581 = vmin.f32 %v1565, 6.0
      %v1582 = vmin.f32 %v1566, 6.0
      %v1583 = vmin.f32 %v1567, 6.0
      %v1584 = vmin.f32 %v1568, 6.0
      %v1585 = vpack.c.bf16 %v1570, %v1569
      %v1586 = vpack.c.bf16 %v1572, %v1571
      %v1587 = vpack.c.bf16 %v1574, %v1573
      %v1588 = vpack.c.bf16 %v1576, %v1575
      %v1589 = vpack.c.bf16 %v1578, %v1577
      %v1590 = vpack.c.bf16 %v1580, %v1579
      %v1591 = vpack.c.bf16 %v1582, %v1581
      %v1592 = vpack.c.bf16 %v1584, %v1583
      %v1593 = vld [vmem:[%s5] sm:$0xf]
      %v1594 = vld [vmem:[%s5 + $0x4] sm:$0xf]
      %v1595 = vld [vmem:[%s5 + $0x8] sm:$0xf]
      %v1596 = vld [vmem:[%s5 + $0xc] sm:$0xf]
      %v1597 = vld [vmem:[%s5 + $0x10] sm:$0xf]
      %v1598 = vld [vmem:[%s5 + $0x14] sm:$0xf]
      %v1599 = vld [vmem:[%s5 + $0x18] sm:$0xf]
      %v1600 = vld [vmem:[%s5 + $0x1c] sm:$0xf]
      %v1601 = vld [vmem:[%s5 + $0x20] sm:$0xf]
      %v1602 = vld [vmem:[%s5 + $0x24] sm:$0xf]
      %v1603 = vld [vmem:[%s5 + $0x28] sm:$0xf]
      %v1604 = vld [vmem:[%s5 + $0x2c] sm:$0xf]
      %v1605 = vld [vmem:[%s5 + $0x30] sm:$0xf]
      %v1606 = vld [vmem:[%s5 + $0x34] sm:$0xf]
      %v1607 = vld [vmem:[%s5 + $0x38] sm:$0xf]
      %v1608 = vld [vmem:[%s5 + $0x3c] sm:$0xf]
      %v1609 = vld [vmem:[%s7] sm:$0x1]
      %v1611 = vperm.slane %v1609, 0
      %v1629 = vunpack.c.l.b16 %v1593
      %v1630 = vunpack.c.l.b16 %v1594
      %v1631 = vunpack.c.l.b16 %v1595
      %v1632 = vunpack.c.l.b16 %v1596
      %v1633 = vunpack.c.l.b16 %v1597
      %v1634 = vunpack.c.l.b16 %v1598
      %v1635 = vunpack.c.l.b16 %v1599
      %v1636 = vunpack.c.l.b16 %v1600
      %v1637 = vunpack.c.l.b16 %v1601
      %v1638 = vunpack.c.l.b16 %v1602
      %v1639 = vunpack.c.l.b16 %v1603
      %v1640 = vunpack.c.l.b16 %v1604
      %v1641 = vunpack.c.l.b16 %v1605
      %v1642 = vunpack.c.l.b16 %v1606
      %v1643 = vunpack.c.l.b16 %v1607
      %v1644 = vunpack.c.l.b16 %v1608
      %v1645 = vpack.c.b16 %v1630, %v1629
      %v1646 = vpack.c.b16 %v1632, %v1631
      %v1647 = vpack.c.b16 %v1634, %v1633
      %v1648 = vpack.c.b16 %v1636, %v1635
      %v1649 = vpack.c.b16 %v1638, %v1637
      %v1650 = vpack.c.b16 %v1640, %v1639
      %v1651 = vpack.c.b16 %v1642, %v1641
      %v1652 = vpack.c.b16 %v1644, %v1643
      %1661 = vmatpush.bf16.msra.mxu0 %v1652
      %1662 = vmatpush.bf16.msra.mxu0 %v1651
      %1663 = vmatpush.bf16.msra.mxu0 %v1650
      %1664 = vmatpush.bf16.msra.mxu0 %v1649
      %1665 = vmatpush.bf16.msra.mxu0 %v1648
      %1666 = vmatpush.bf16.msra.mxu0 %v1647
      %1667 = vmatpush.bf16.msra.mxu0 %v1646
      %1668 = vmatpush.bf16.msra.mxu0 %v1645
      %1669 = vmatmul.bf16.gmra.mxu0 %v1585
      %v1670 = vpop.f32.mrf.mxu0
      %v1671 = vadd.f32 %v1611, %v1670
      %v1672 = vpop.f32.mrf.mxu0
      %v1673 = vadd.f32 %v1611, %v1672
      %1674 = vmatmul.bf16.gmra.mxu0 %v1586
      %v1675 = vpop.f32.mrf.mxu0
      %v1676 = vadd.f32 %v1611, %v1675
      %v1677 = vpop.f32.mrf.mxu0
      %v1678 = vadd.f32 %v1611, %v1677
      %1679 = vmatmul.bf16.gmra.mxu0 %v1587
      %v1680 = vpop.f32.mrf.mxu0
      %v1681 = vadd.f32 %v1611, %v1680
      %v1682 = vpop.f32.mrf.mxu0
      %v1683 = vadd.f32 %v1611, %v1682
      %1684 = vmatmul.bf16.gmra.mxu0 %v1588
      %v1685 = vpop.f32.mrf.mxu0
      %v1686 = vadd.f32 %v1611, %v1685
      %v1687 = vpop.f32.mrf.mxu0
      %v1688 = vadd.f32 %v1611, %v1687
      %1689 = vmatmul.bf16.gmra.mxu0 %v1589
      %v1690 = vpop.f32.mrf.mxu0
      %v1691 = vadd.f32 %v1611, %v1690
      %v1692 = vpop.f32.mrf.mxu0
      %v1693 = vadd.f32 %v1611, %v1692
      %1694 = vmatmul.bf16.gmra.mxu0 %v1590
      %v1695 = vpop.f32.mrf.mxu0
      %v1696 = vadd.f32 %v1611, %v1695
      %v1697 = vpop.f32.mrf.mxu0
      %v1698 = vadd.f32 %v1611, %v1697
      %1699 = vmatmul.bf16.gmra.mxu0 %v1591
      %v1700 = vpop.f32.mrf.mxu0
      %v1701 = vadd.f32 %v1611, %v1700
      %v1702 = vpop.f32.mrf.mxu0
      %v1703 = vadd.f32 %v1611, %v1702
      %1704 = vmatmul.bf16.gmra.mxu0 %v1592
      %v1705 = vpop.f32.mrf.mxu0
      %v1706 = vadd.f32 %v1611, %v1705
      %v1707 = vpop.f32.mrf.mxu0
      %v1708 = vadd.f32 %v1611, %v1707
      %1709 = vdwg.mxu0
      %s1710 = sadd.s32 %s330, 1
      %s1711 = smul.u32 %s1710, 24
      %s1712 = scalar_lea.vmem %s318, %s1711
      %v1713 = vld [vmem:[%s1712 + $0x1] sm:$0xff]
      %v1714 = vld [vmem:[%s1712 + $0x9] sm:$0xff]
      %v1715 = vld [vmem:[%s1712 + $0x19] sm:$0xff]
      %v1716 = vld [vmem:[%s1712 + $0x21] sm:$0xff]
      %v1717 = vld [vmem:[%s1712 + $0x31] sm:$0xff]
      %v1718 = vld [vmem:[%s1712 + $0x39] sm:$0xff]
      %v1719 = vld [vmem:[%s1712 + $0x49] sm:$0xff]
      %v1720 = vld [vmem:[%s1712 + $0x51] sm:$0xff]
      %v1721 = vld [vmem:[%s1712 + $0x61] sm:$0xff]
      %v1722 = vld [vmem:[%s1712 + $0x69] sm:$0xff]
      %v1723 = vld [vmem:[%s1712 + $0x79] sm:$0xff]
      %v1724 = vld [vmem:[%s1712 + $0x81] sm:$0xff]
      %v1725 = vld [vmem:[%s1712 + $0x91] sm:$0xff]
      %v1726 = vld [vmem:[%s1712 + $0x99] sm:$0xff]
      %v1727 = vld [vmem:[%s1712 + $0xa9] sm:$0xff]
      %v1728 = vld [vmem:[%s1712 + $0xb1] sm:$0xff]
      %v1729 = vpack.c.bf16 %v1714, %v1713
      %v1730 = vpack.c.bf16 %v1716, %v1715
      %v1731 = vpack.c.bf16 %v1718, %v1717
      %v1732 = vpack.c.bf16 %v1720, %v1719
      %v1733 = vpack.c.bf16 %v1722, %v1721
      %v1734 = vpack.c.bf16 %v1724, %v1723
      %v1735 = vpack.c.bf16 %v1726, %v1725
      %v1736 = vpack.c.bf16 %v1728, %v1727
      %v1737 = vld [vmem:[%s6] sm:$0x3]
      %v1739 = vsel %vm613, %v1729, 0
      %v1742 = vsel %vm613, %v1730, 0
      %v1745 = vsel %vm613, %v1731, 0
      %v1748 = vsel %vm613, %v1732, 0
      %v1751 = vsel %vm613, %v1733, 0
      %v1754 = vsel %vm613, %v1734, 0
      %v1757 = vsel %vm613, %v1735, 0
      %v1760 = vsel %vm613, %v1736, 0
      %v1763 = vsel %vm650, %v1737, 0
      %1765 = vmatpush.bf16.msra.mxu0 0
      %1766 = vmatpush.bf16.msra.mxu0 0
      %1767 = vmatpush.bf16.msra.mxu0 0
      %1768 = vmatpush.bf16.msra.mxu0 0
      %1769 = vmatpush.bf16.msra.mxu0 0
      %1770 = vmatpush.bf16.msra.mxu0 0
      %1771 = vmatpush.bf16.msra.mxu0 0
      %1772 = vmatpush.bf16.msra.mxu0 %v1763
      %1773 = vmatmul.bf16.gmra.mxu0 %v1739
      %v1774 = vpop.f32.mrf.mxu0
      %v1775 = vadd.f32 0.0, %v1774
      %v1776 = vpop.f32.mrf.mxu0
      %v1777 = vadd.f32 0.0, %v1776
      %1778 = vmatmul.bf16.gmra.mxu0 %v1742
      %v1779 = vpop.f32.mrf.mxu0
      %v1780 = vadd.f32 0.0, %v1779
      %v1781 = vpop.f32.mrf.mxu0
      %v1782 = vadd.f32 0.0, %v1781
      %1783 = vmatmul.bf16.gmra.mxu0 %v1745
      %v1784 = vpop.f32.mrf.mxu0
      %v1785 = vadd.f32 0.0, %v1784
      %v1786 = vpop.f32.mrf.mxu0
      %v1787 = vadd.f32 0.0, %v1786
      %1788 = vmatmul.bf16.gmra.mxu0 %v1748
      %v1789 = vpop.f32.mrf.mxu0
      %v1790 = vadd.f32 0.0, %v1789
      %v1791 = vpop.f32.mrf.mxu0
      %v1792 = vadd.f32 0.0, %v1791
      %1793 = vmatmul.bf16.gmra.mxu0 %v1751
      %v1794 = vpop.f32.mrf.mxu0
      %v1795 = vadd.f32 0.0, %v1794
      %v1796 = vpop.f32.mrf.mxu0
      %v1797 = vadd.f32 0.0, %v1796
      %1798 = vmatmul.bf16.gmra.mxu0 %v1754
      %v1799 = vpop.f32.mrf.mxu0
      %v1800 = vadd.f32 0.0, %v1799
      %v1801 = vpop.f32.mrf.mxu0
      %v1802 = vadd.f32 0.0, %v1801
      %1803 = vmatmul.bf16.gmra.mxu0 %v1757
      %v1804 = vpop.f32.mrf.mxu0
      %v1805 = vadd.f32 0.0, %v1804
      %v1806 = vpop.f32.mrf.mxu0
      %v1807 = vadd.f32 0.0, %v1806
      %1808 = vmatmul.bf16.gmra.mxu0 %v1760
      %v1809 = vpop.f32.mrf.mxu0
      %v1810 = vadd.f32 0.0, %v1809
      %v1811 = vpop.f32.mrf.mxu0
      %v1812 = vadd.f32 0.0, %v1811
      %1813 = vdwg.mxu0
      %v1814 = vadd.f32 %v1671, %v1775
      %v1815 = vadd.f32 %v1673, %v1777
      %v1816 = vadd.f32 %v1676, %v1780
      %v1817 = vadd.f32 %v1678, %v1782
      %v1818 = vadd.f32 %v1681, %v1785
      %v1819 = vadd.f32 %v1683, %v1787
      %v1820 = vadd.f32 %v1686, %v1790
      %v1821 = vadd.f32 %v1688, %v1792
      %v1822 = vadd.f32 %v1691, %v1795
      %v1823 = vadd.f32 %v1693, %v1797
      %v1824 = vadd.f32 %v1696, %v1800
      %v1825 = vadd.f32 %v1698, %v1802
      %v1826 = vadd.f32 %v1701, %v1805
      %v1827 = vadd.f32 %v1703, %v1807
      %v1828 = vadd.f32 %v1706, %v1810
      %v1829 = vadd.f32 %v1708, %v1812
      %vm1830 = vcmask 64512
      %1831 = vst.msk [vmem:[%s327] sm:$0xff] %vm1830, %v1814
      %1832 = vst.msk [vmem:[%s327 + $0x8] sm:$0xff] %vm1830, %v1815
      %1833 = vst.msk [vmem:[%s327 + $0x10] sm:$0xff] %vm1830, %v1816
      %1834 = vst.msk [vmem:[%s327 + $0x18] sm:$0xff] %vm1830, %v1817
      %1835 = vst.msk [vmem:[%s327 + $0x20] sm:$0xff] %vm1830, %v1818
      %1836 = vst.msk [vmem:[%s327 + $0x28] sm:$0xff] %vm1830, %v1819
      %1837 = vst.msk [vmem:[%s327 + $0x30] sm:$0xff] %vm1830, %v1820
      %1838 = vst.msk [vmem:[%s327 + $0x38] sm:$0xff] %vm1830, %v1821
      %1839 = vst.msk [vmem:[%s327 + $0x40] sm:$0xff] %vm1830, %v1822
      %1840 = vst.msk [vmem:[%s327 + $0x48] sm:$0xff] %vm1830, %v1823
      %1841 = vst.msk [vmem:[%s327 + $0x50] sm:$0xff] %vm1830, %v1824
      %1842 = vst.msk [vmem:[%s327 + $0x58] sm:$0xff] %vm1830, %v1825
      %1843 = vst.msk [vmem:[%s327 + $0x60] sm:$0xff] %vm1830, %v1826
      %1844 = vst.msk [vmem:[%s327 + $0x68] sm:$0xff] %vm1830, %v1827
      %1845 = vst.msk [vmem:[%s327 + $0x70] sm:$0xff] %vm1830, %v1828
      %1846 = vst.msk [vmem:[%s327 + $0x78] sm:$0xff] %vm1830, %v1829
      %s1847 = smul.u32 16, %s24
      %p1848 = scmp.lt.s32.totalorder %s23, 1
      %s1849 = scalar_select %p1848, %s23, 1
      %p1850 = scmp.lt.s32.totalorder %s1847, 31
      %s1851 = scalar_select %p1850, %s1847, 31
      %s1852 = smul.addr %s1849, 32
      %s1853 = sadd.s32 %s1851, %s1852
      %s1854 = smul.addr %s1853, 8
      %s1855 = scalar_lea.vmem %s8, %s1854
      // Predicated region
      $region61: #{tpu_custom_call.1} parent=51 // pred_check
        %p1856 = pneg %p224
      $region62: #{tpu_custom_call.1} parent=51 // pred_check_branch
        %1858 = sbr.rel (%p1856) target = $region64
      $region63: #{tpu_custom_call.1} parent=51 // pred_region
        %s1859 = smul.u32 16, %s24
      $region64: #{tpu_custom_call.1} parent=51 // pred_fallthru
        _
    $region52: #{tpu_custom_call.1} parent=5 // pred_fallthru
      _
    %p1860 = scmp.le.s32.totalorder 2, %s14
    // Predicated region
    $region65: #{tpu_custom_call.1} parent=5 // pred_check
      %p1861 = pneg %p1860
    $region66: #{tpu_custom_call.1} parent=5 // pred_check_branch
      %1863 = sbr.rel (%p1861) target = $region68
    $region67: #{tpu_custom_call.1} parent=5 // pred_region
      %s1864 = ssub.s32 %s14, 2
      // Predicated region
      $region69: #{tpu_custom_call.1} parent=67 // pred_check
        %p1865 = pneg %p230
      $region70: #{tpu_custom_call.1} parent=67 // pred_check_branch
        %1867 = sbr.rel (%p1865) target = $region72
      $region71: #{tpu_custom_call.1} parent=67 // pred_region
        %s1868 = smul.u32 16, %s26
        %p1869 = scmp.lt.s32.totalorder %s25, 1
        %s1870 = scalar_select %p1869, %s25, 1
        %p1871 = scmp.lt.s32.totalorder %s1868, 31
        %s1872 = scalar_select %p1871, %s1868, 31
        %s1873 = smul.addr %s1870, 32
        %s1874 = sadd.s32 %s1872, %s1873
        %s1875 = smul.addr %s1874, 8
        %s1876 = scalar_lea.vmem %s8, %s1875
      $region72: #{tpu_custom_call.1} parent=67 // pred_fallthru
        _
    $region68: #{tpu_custom_call.1} parent=5 // pred_fallthru
      _
  $region6: #{tpu_custom_call.1} parent=0 // loop_footer
    %s18 = sadd.s32 1, %s14
  $region7: #{tpu_custom_call.1} parent=0 // loop_footer_branch
    %13 = sbr.rel target = $region3
  $region8: #{tpu_custom_call.1} parent=0 // loop_exit
    _

</llo_original>
